<compile_context>
chip_gen: v5e
topology: v5e:2x2
jax: 0.10.0
libtpu: 0.0.40
codegen_flags: <defaults>
</compile_context>

<pallas_src>
import functools
import math

import jax
import jax.numpy as jnp
from jax.experimental import pallas as pl
from jax.experimental.pallas import tpu as pltpu

ACT_RANGE = 6.0  # QModule init_range (activation_range parameter init)


def _mix_activ_conv_kernel(scales_ref, x_ref, w_ref, out_ref, *,
                           abits, act_range, KH, KW, stride, OW, tile_oh, cin):
    """Fused mixed-bit activation quantization + conv (in-kernel im2col, single matmul).

    scales_ref : (n_abits,)          f32  SMEM -- softmax(alpha_activ)[i] * step_i (pre-folded)
    x_ref      : (nrows, Wp, Cin)    f32  VMEM -- one padded input row-slab (image n, block r)
    w_ref      : (KH*KW*Cin, Coutp)  bf16 VMEM -- mixed quantized weights, Cout padded to Coutp
    out_ref    : (tile_oh*OW, Coutp) f32  VMEM -- one block of whole output rows
    """
    xs = x_ref[...]                                   # (nrows, Wp, Cin) f32
    # ---- mixed-bit half-wave activation quantization (f32 VPU math) ----
    # clip hoisted out of the bit loop; first bit's term initializes the accumulator.
    xc = jnp.clip(xs, 0.0, act_range)
    inv0 = (2.0 ** abits[0] - 1.0) / act_range        # Python float constant
    mixed = jnp.round(xc * inv0) * scales_ref[0]
    for i in range(1, len(abits)):
        inv_step = (2.0 ** abits[i] - 1.0) / act_range
        mixed = mixed + jnp.round(xc * inv_step) * scales_ref[i]
    mixed = mixed.astype(jnp.bfloat16)                # MXU operands in bf16
    # TODO(synk): for Cin << 128 the per-bit loop underfills VPU lanes (Cin on the lane axis);
    #             a lane-dense (nrows, Wp*Cin) view would recover up to 128/Cin VPU throughput
    #             at the cost of one relayout -- left out to keep the reshape set known-good.

    # ---- in-kernel im2col: build the (tile_m, KH*KW*Cin) slab, then ONE fused-K matmul ----
    tile_m = tile_oh * OW
    taps = []
    for kh in range(KH):
        for kw in range(KW):
            # stride == 1 -> contiguous slices; stride > 1 pays a strided-slice relayout.
            # TODO(synk): for stride > 1, decimate rows at DMA/ref-load level instead.
            xt = mixed[kh:kh + (tile_oh - 1) * stride + 1:stride,
                       kw:kw + (OW - 1) * stride + 1:stride, :]   # (tile_oh, OW, Cin)
            taps.append(xt.reshape(tile_m, cin))
    slab = taps[0] if len(taps) == 1 else jnp.concatenate(taps, axis=-1)  # (tile_m, KH*KW*Cin)
    out_ref[...] = jnp.dot(slab, w_ref[...], preferred_element_type=jnp.float32)


def _vmem_budget_bytes():
    """Per-chip VMEM budget: ~48 MiB on 64 MiB parts (v7x), up to ~96 MiB on 128 MiB parts."""
    cap = 64 << 20
    try:
        cap = int(getattr(pltpu.get_tpu_info(), "vmem_capacity_bytes", cap))
    except Exception:
        pass
    return int(min(cap * 3 // 4, 96 << 20))


def mix_activ_conv2d(x_nchw, params, *, abits, wbits, stride=1, padding=1,
                     act_range=ACT_RANGE, vmem_budget_bytes=None):
    """Forward pass of MixActivConv2d (share_weight=False, bias=False). Returns NCHW."""
    N, Cin, H, W = x_nchw.shape
    conv_weights = params["conv_weights"]          # list of (Cout, Cin, KH, KW)
    Cout, _, KH, KW = conv_weights[0].shape
    OH = (H + 2 * padding - KH) // stride + 1
    OW = (W + 2 * padding - KW) // stride + 1
    assert all(b > 1 for b in wbits), "wbit=1 divides by zero in the HAQ weight-scale formula"

    # --- bookkeeping buffers from the PyTorch forward (not used for the output) ---
    memory_size = Cin * H * W * 0.001
    param_size = Cin * Cout * KH * KW * 1e-6
    filter_size = param_size / float(stride ** 2)
    size_product = filter_size * H * W
    del memory_size, size_product  # buffers only; no effect on `out`

    # --- architecture softmax weights (glue) ---
    sw_a = jax.nn.softmax(params["alpha_activ"]).astype(jnp.float32)
    sw_w = jax.nn.softmax(params["alpha_weight"]).astype(jnp.float32)

    # --- weight quantization + mixing (tiny: Cout*Cin*KH*KW elems -> plain JAX glue) ---
    mixed_w = jnp.zeros_like(conv_weights[0])
    for i, bit in enumerate(wbits):
        w = conv_weights[i]
        thr = jnp.max(jnp.abs(w))                              # weight_range <= 0 -> max|w|
        scale = thr / (2.0 ** (bit - 1) - 1.0)
        mixed_w = mixed_w + sw_w[i] * (jnp.round(jnp.clip(w, -thr, thr) / scale) * scale)

    # Fused-K weight layout: (KH*KW*Cin, Coutp), K ordered (kh, kw, c) to match the slab.
    # Coutp = multiple of 128 -> lane-dense, unmasked stores (also covers the v6e 256-wide case).
    Coutp = ((Cout + 127) // 128) * 128
    Ktot = KH * KW * Cin
    wmat = mixed_w.transpose(2, 3, 1, 0).reshape(Ktot, Cout)
    wmat = jnp.pad(wmat, ((0, 0), (0, Coutp - Cout))).astype(jnp.bfloat16)

    # Per-bit effective scale with softmax weight folded in (read from SMEM in the kernel).
    a_scales = (sw_a * jnp.asarray([act_range / (2.0 ** b - 1.0) for b in abits],
                                   jnp.float32)).astype(jnp.float32)

    # --- tiling: blocks of tile_oh whole output rows, sized from the per-chip VMEM budget ---
    Wp = W + 2 * padding
    Hp = H + 2 * padding
    budget = int(vmem_budget_bytes) if vmem_budget_bytes is not None else _vmem_budget_bytes()
    gran = 8 // math.gcd(OW, 8)                       # ensures tile_m = tile_oh*OW % 8 == 0
    oh_cap = ((OH + gran - 1) // gran) * gran

    def est_bytes(toh):
        nr = (toh - 1) * stride + KH
        tm = toh * OW
        in_b = 2 * nr * Wp * Cin * 4                  # double-buffered input row slab (f32)
        out_b = 2 * tm * Coutp * 4                    # double-buffered output block (f32)
        w_b = 2 * Ktot * Coutp * 2                    # resident weights (double-buffered)
        # in-kernel temporaries: clip/mixed f32 + bf16 mixed + bf16 slab + f32 matmul result
        tmp_b = nr * Wp * Cin * 10 + tm * Ktot * 2 + tm * Coutp * 4
        return in_b + out_b + w_b + tmp_b + (2 << 20)

    tile_oh, t = gran, gran
    while t <= oh_cap:
        if est_bytes(t) <= budget:
            tile_oh = t
        t += gran
    RB = -(-OH // tile_oh)
    if N * RB < 2 and oh_cap >= 2 * gran:             # keep >= 2 grid steps for megacore
        tile_oh = ((oh_cap // 2 + gran - 1) // gran) * gran
        RB = -(-OH // tile_oh)
    OHp = RB * tile_oh
    tile_m = tile_oh * OW
    row_step = tile_oh * stride
    nrows = (tile_oh - 1) * stride + KH
    Hpp = (OHp - 1) * stride + KH                     # rows needed to cover the padded OHp

    # Padded NHWC input in f32; pre-slice overlapping row slabs (halo rows duplicated in HBM,
    # ~(KH-stride)/row_step extra) so the input block scales with tile_oh, not the image.
    # Zero padding quantizes to zero, so quantizing the padded input is equivalent.
    # TODO(synk): a bf16 input (upcast in-kernel before clip/round) would halve input DMA on
    #             HBM-bound layers (v5e) if .5-boundary rounding drift vs f32 is acceptable.
    x_nhwc = jnp.transpose(x_nchw, (0, 2, 3, 1)).astype(jnp.float32)
    xp = jnp.pad(x_nhwc, ((0, 0), (padding, padding + max(0, Hpp - Hp)),
                          (padding, padding), (0, 0)))
    x_slabs = jnp.stack([xp[:, r * row_step:r * row_step + nrows]
                         for r in range(RB)], axis=1)          # (N, RB, nrows, Wp, Cin)

    kern = functools.partial(_mix_activ_conv_kernel, abits=tuple(abits),
                             act_range=float(act_range), KH=KH, KW=KW,
                             stride=stride, OW=OW, tile_oh=tile_oh, cin=Cin)

    vmem_limit = int(max(budget, est_bytes(tile_oh) + (8 << 20)))

    out_mat = pl.pallas_call(
        kern,
        out_shape=jax.ShapeDtypeStruct((N * RB * tile_m, Coutp), jnp.float32),
        grid=(N, RB),
        in_specs=[
            pl.BlockSpec(memory_space=pltpu.MemorySpace.SMEM),               # folded scales
            pl.BlockSpec((None, None, nrows, Wp, Cin),
                         lambda n, r: (n, r, 0, 0, 0)),                      # one row slab
            # TODO(synk): pipeline_mode=pl.Buffered(1) on this constant block would reclaim
            #             its second buffer (matters for large Cin*KH*KW*Cout layers).
            pl.BlockSpec((Ktot, Coutp), lambda n, r: (0, 0)),                # resident weights
        ],
        out_specs=pl.BlockSpec((tile_m, Coutp), lambda n, r: (n * RB + r, 0)),
        compiler_params=pltpu.CompilerParams(
            dimension_semantics=("parallel", "parallel"),
            vmem_limit_bytes=vmem_limit),
    )(a_scales, x_slabs, wmat)

    # (N*RB*tile_m, Coutp) -> NHWC, drop OH/Cout padding -> NCHW (module output layout).
    # TODO(synk): callers that can consume NHWC should skip this transpose (extra HBM pass).
    out = out_mat.reshape(N, OHp, OW, Coutp)[:, :OH, :, :Cout].transpose(0, 3, 1, 2)
    return out


def _mixed_operands(x_nchw, params, *, abits, wbits, act_range):
    """Mixed-quantized activation & weight, computed exactly like the kernel (f32)."""
    sw_a = jax.nn.softmax(params["alpha_activ"]).astype(jnp.float32)
    sw_w = jax.nn.softmax(params["alpha_weight"]).astype(jnp.float32)
    a_scales = sw_a * jnp.asarray([act_range / (2.0 ** b - 1.0) for b in abits], jnp.float32)
    xc = jnp.clip(x_nchw.astype(jnp.float32), 0.0, act_range)
    act = jnp.zeros_like(xc)
    for i, bit in enumerate(abits):
        inv_step = (2.0 ** bit - 1.0) / act_range
        act = act + jnp.round(xc * inv_step) * a_scales[i]
    mixed_w = jnp.zeros_like(params["conv_weights"][0])
    for i, bit in enumerate(wbits):
        w = params["conv_weights"][i]
        thr = jnp.max(jnp.abs(w))
        s = thr / (2.0 ** (bit - 1) - 1.0)
        mixed_w = mixed_w + sw_w[i] * (jnp.round(jnp.clip(w, -thr, thr) / s) * s)
    return act, mixed_w


def _reference_f32(x_nchw, params, *, abits, wbits, stride=1, padding=1, act_range=ACT_RANGE):
    """Pure-f32 JAX reference mirroring the PyTorch forward."""
    act, mixed_w = _mixed_operands(x_nchw, params, abits=abits, wbits=wbits,
                                   act_range=act_range)
    return jax.lax.conv_general_dilated(
        act, mixed_w, (stride, stride), [(padding, padding), (padding, padding)],
        dimension_numbers=("NCHW", "OIHW", "NCHW"))


def _reference_bf16(x_nchw, params, *, abits, wbits, stride=1, padding=1, act_range=ACT_RANGE):
    """Reference with the same bf16 MXU operands the kernel uses (f32 accumulation)."""
    act, mixed_w = _mixed_operands(x_nchw, params, abits=abits, wbits=wbits,
                                   act_range=act_range)
    return jax.lax.conv_general_dilated(
        act.astype(jnp.bfloat16), mixed_w.astype(jnp.bfloat16),
        (stride, stride), [(padding, padding), (padding, padding)],
        dimension_numbers=("NCHW", "OIHW", "NCHW"),
        preferred_element_type=jnp.float32)


if __name__ == "__main__":
    # Small shapes consistent with the module: NCHW input, 3x3 conv, stride 1, pad 1.
    N, Cin, H, W = 2, 4, 16, 16
    Cout, K = 8, 3
    abits = [2, 4]
    wbits = [2, 3]

    key = jax.random.PRNGKey(0)
    kx, kw = jax.random.split(key)
    x = jax.random.normal(kx, (N, Cin, H, W), jnp.float32)
    conv_weights = [jax.random.normal(k, (Cout, Cin, K, K), jnp.float32) * 0.1
                    for k in jax.random.split(kw, len(wbits))]
    params = {
        "alpha_activ": jnp.full((len(abits),), 0.01, jnp.float32),   # Parameter.fill_(0.01)
        "alpha_weight": jnp.full((len(wbits),), 0.01, jnp.float32),  # Parameter.fill_(0.01)
        "conv_weights": conv_weights,
    }

    out = mix_activ_conv2d(x, params, abits=abits, wbits=wbits, stride=1, padding=1)
    out = jax.block_until_ready(out)
    assert out.shape == (N, Cout, H, W), out.shape

    # Exact-operand check (same bf16 matmul operands as the kernel).
    ref_b = _reference_bf16(x, params, abits=abits, wbits=wbits, stride=1, padding=1)
    assert jnp.allclose(out, ref_b, atol=1e-2, rtol=1e-2), \
        float(jnp.max(jnp.abs(out - ref_b)))

    # Sanity check against the pure-f32 module semantics (bf16 MXU operands => looser tol).
    ref_f = _reference_f32(x, params, abits=abits, wbits=wbits, stride=1, padding=1)
    assert jnp.allclose(out, ref_f, atol=5e-2, rtol=5e-2), \
        float(jnp.max(jnp.abs(out - ref_f)))

    print("KERNEL_OK")
</pallas_src>

<mosaic_0001>
module attributes {stable_mosaic.version = 11 : i64} {
  func.func @_mix_activ_conv_kernel(%arg0: i32, %arg1: i32, %arg2: memref<2xf32, #tpu.memory_space<smem>>, %arg3: memref<1x1x18x18x4xf32, #tpu.memory_space<vmem>>, %arg4: memref<36x128xbf16, #tpu.memory_space<vmem>>, %arg5: memref<256x128xf32, #tpu.memory_space<vmem>>) attributes {dimension_semantics = [#tpu.dimension_semantics<parallel>, #tpu.dimension_semantics<parallel>], iteration_bounds = array<i64: 2, 1>, scalar_prefetch = 0 : i64, scratch_operands = 0 : i64, tpu.core_type = #tpu.core_type<tc>, window_params = [{transform_indices = @transform_0, window_bounds = array<i64: 2>}, {transform_indices = @transform_1, window_bounds = array<i64: 1, 1, 18, 18, 4>}, {pipeline_mode = #tpu.pipeline_mode<synchronous>, transform_indices = @transform_2, window_bounds = array<i64: 36, 128>}, {transform_indices = @transform_3, window_bounds = array<i64: 256, 128>}]} {
    %c0 = arith.constant 0 : index
    %c0_0 = arith.constant 0 : index
    %c0_1 = arith.constant 0 : index
    %c0_2 = arith.constant 0 : index
    %c0_3 = arith.constant 0 : index
    %0 = vector.load %arg3[%c0, %c0_0, %c0_1, %c0_2, %c0_3] : memref<1x1x18x18x4xf32, #tpu.memory_space<vmem>>, vector<1x1x18x18x4xf32>
    %1 = vector.shape_cast %0 : vector<1x1x18x18x4xf32> to vector<18x18x4xf32>
    %cst = arith.constant 0.000000e+00 : f32
    %cst_4 = arith.constant 6.000000e+00 : f32
    %2 = vector.broadcast %cst : f32 to vector<18x18x4xf32>
    %3 = arith.maximumf %2, %1 : vector<18x18x4xf32>
    %4 = vector.broadcast %cst_4 : f32 to vector<18x18x4xf32>
    %5 = arith.minimumf %4, %3 : vector<18x18x4xf32>
    %cst_5 = arith.constant 5.000000e-01 : f32
    %6 = vector.broadcast %cst_5 : f32 to vector<18x18x4xf32>
    %7 = arith.mulf %5, %6 : vector<18x18x4xf32>
    %8 = math.roundeven %7 : vector<18x18x4xf32>
    %c0_6 = arith.constant 0 : index
    %9 = memref.load %arg2[%c0_6] : memref<2xf32, #tpu.memory_space<smem>>
    %10 = vector.broadcast %9 : f32 to vector<18x18x4xf32>
    %11 = arith.mulf %8, %10 : vector<18x18x4xf32>
    %cst_7 = arith.constant 2.500000e+00 : f32
    %12 = vector.broadcast %cst_7 : f32 to vector<18x18x4xf32>
    %13 = arith.mulf %5, %12 : vector<18x18x4xf32>
    %14 = math.roundeven %13 : vector<18x18x4xf32>
    %c1 = arith.constant 1 : index
    %15 = memref.load %arg2[%c1] : memref<2xf32, #tpu.memory_space<smem>>
    %16 = vector.broadcast %15 : f32 to vector<18x18x4xf32>
    %17 = arith.mulf %14, %16 : vector<18x18x4xf32>
    %18 = arith.addf %11, %17 : vector<18x18x4xf32>
    %19 = arith.truncf %18 : vector<18x18x4xf32> to vector<18x18x4xbf16>
    %20 = vector.extract_strided_slice %19 {offsets = [0, 0, 0], sizes = [16, 16, 4], strides = [1, 1, 1]} : vector<18x18x4xbf16> to vector<16x16x4xbf16>
    %21 = vector.shape_cast %20 : vector<16x16x4xbf16> to vector<256x4xbf16>
    %22 = vector.extract_strided_slice %19 {offsets = [0, 1, 0], sizes = [16, 16, 4], strides = [1, 1, 1]} : vector<18x18x4xbf16> to vector<16x16x4xbf16>
    %23 = vector.shape_cast %22 : vector<16x16x4xbf16> to vector<256x4xbf16>
    %24 = vector.extract_strided_slice %19 {offsets = [0, 2, 0], sizes = [16, 16, 4], strides = [1, 1, 1]} : vector<18x18x4xbf16> to vector<16x16x4xbf16>
    %25 = vector.shape_cast %24 : vector<16x16x4xbf16> to vector<256x4xbf16>
    %26 = vector.extract_strided_slice %19 {offsets = [1, 0, 0], sizes = [16, 16, 4], strides = [1, 1, 1]} : vector<18x18x4xbf16> to vector<16x16x4xbf16>
    %27 = vector.shape_cast %26 : vector<16x16x4xbf16> to vector<256x4xbf16>
    %28 = vector.extract_strided_slice %19 {offsets = [1, 1, 0], sizes = [16, 16, 4], strides = [1, 1, 1]} : vector<18x18x4xbf16> to vector<16x16x4xbf16>
    %29 = vector.shape_cast %28 : vector<16x16x4xbf16> to vector<256x4xbf16>
    %30 = vector.extract_strided_slice %19 {offsets = [1, 2, 0], sizes = [16, 16, 4], strides = [1, 1, 1]} : vector<18x18x4xbf16> to vector<16x16x4xbf16>
    %31 = vector.shape_cast %30 : vector<16x16x4xbf16> to vector<256x4xbf16>
    %32 = vector.extract_strided_slice %19 {offsets = [2, 0, 0], sizes = [16, 16, 4], strides = [1, 1, 1]} : vector<18x18x4xbf16> to vector<16x16x4xbf16>
    %33 = vector.shape_cast %32 : vector<16x16x4xbf16> to vector<256x4xbf16>
    %34 = vector.extract_strided_slice %19 {offsets = [2, 1, 0], sizes = [16, 16, 4], strides = [1, 1, 1]} : vector<18x18x4xbf16> to vector<16x16x4xbf16>
    %35 = vector.shape_cast %34 : vector<16x16x4xbf16> to vector<256x4xbf16>
    %36 = vector.extract_strided_slice %19 {offsets = [2, 2, 0], sizes = [16, 16, 4], strides = [1, 1, 1]} : vector<18x18x4xbf16> to vector<16x16x4xbf16>
    %37 = vector.shape_cast %36 : vector<16x16x4xbf16> to vector<256x4xbf16>
    %38 = tpu.concatenate %21, %23, %25, %27, %29, %31, %33, %35, %37 in 1 : vector<256x4xbf16>, vector<256x4xbf16>, vector<256x4xbf16>, vector<256x4xbf16>, vector<256x4xbf16>, vector<256x4xbf16>, vector<256x4xbf16>, vector<256x4xbf16>, vector<256x4xbf16> -> vector<256x36xbf16>
    %c0_8 = arith.constant 0 : index
    %c0_9 = arith.constant 0 : index
    %39 = vector.load %arg4[%c0_8, %c0_9] : memref<36x128xbf16, #tpu.memory_space<vmem>>, vector<36x128xbf16>
    %cst_10 = arith.constant dense<0.000000e+00> : vector<256x128xf32>
    %40 = tpu.matmul %38, %39, %cst_10 {dimension_numbers = #tpu.dot_dimension_numbers<[1], [0], [0], [1], [0, 0, 1, 1], [], []>} : vector<256x36xbf16>, vector<36x128xbf16>, vector<256x128xf32> -> vector<256x128xf32>
    %c0_11 = arith.constant 0 : index
    %c0_12 = arith.constant 0 : index
    %41 = vector.load %arg5[%c0_11, %c0_12] : memref<256x128xf32, #tpu.memory_space<vmem>>, vector<256x128xf32>
    tpu.vector_store %arg5[%c0_11, %c0_12], %40 {strides = array<i32>} : memref<256x128xf32, #tpu.memory_space<vmem>>, vector<256x128xf32>,
    return
  }
  func.func @transform_0(%arg0: i32, %arg1: i32) -> i32 {
    %c0_i32 = arith.constant 0 : i32
    %c0_i32_0 = arith.constant 0 : i32
    return %c0_i32 : i32
  }
  func.func @transform_1(%arg0: i32, %arg1: i32) -> (i32, i32, i32, i32, i32) {
    %c0_i32 = arith.constant 0 : i32
    %c0_i32_0 = arith.constant 0 : i32
    %c0_i32_1 = arith.constant 0 : i32
    %c0_i32_2 = arith.constant 0 : i32
    return %arg0, %arg1, %c0_i32, %c0_i32_0, %c0_i32_1 : i32, i32, i32, i32, i32
  }
  func.func @transform_2(%arg0: i32, %arg1: i32) -> (i32, i32) {
    %c0_i32 = arith.constant 0 : i32
    %c0_i32_0 = arith.constant 0 : i32
    %c0_i32_1 = arith.constant 0 : i32
    return %c0_i32, %c0_i32_0 : i32, i32
  }
  func.func @transform_3(%arg0: i32, %arg1: i32) -> (i32, i32) {
    %c1_i32 = arith.constant 1 : i32
    %0 = arith.muli %arg0, %c1_i32 : i32
    %1 = arith.addi %0, %arg1 : i32
    %c0_i32 = arith.constant 0 : i32
    %c0_i32_0 = arith.constant 0 : i32
    return %1, %c0_i32 : i32, i32
  }
}

</mosaic_0001>

<llo_original>
// kernel: tpu_custom_call.1
$region0: #{tpu_custom_call.1}
  #allocation0 [shape = 'u32[]', space=smem, size = 0x4, offset = 0x4, fixed_abs, tag = 'smem constant byte address 0x4 - core index']
  #allocation1 [shape = 'u32[72,128]{1,0:T(1,128)}', space=vmem, size = 0x9000, scoped, tag = 'internal scratch']
  %s0 = inlined_call_operand.vmem [shape: f32[2], index: 0, kind: input, shape index: {}]
  %s1 = inlined_call_operand.vmem [shape: f32[2,1,18,18,4], index: 1, kind: input, shape index: {}]
  %s2 = inlined_call_operand.vmem [shape: bf16[36,128], index: 2, kind: input, shape index: {}]
  %s3 = inlined_call_operand.hbm [shape: f32[512,128], index: 3, kind: output, shape index: {}]
  %s4 = sld [smem:[#allocation0]]
  $region49: #{tpu_custom_call.1} parent=0
    _
  %s6 = ssub.s32 1, %s4
  %s7 = scalar_select 0, %s6, %s4
  $region1: #{tpu_custom_call.1} parent=0
    #allocation2 [shape = 'u8[512]{0}', space=smem, size = 0x200, scoped, tag = 'input window, operand 0, single buffered']
    #allocation3 [shape = 's32[2]{0}', space=sflag, size = 0x8, scoped, tag = 'scoped memory for tpu_custom_call.1']
    #allocation4 [shape = 's32[2]{0}', space=sflag, size = 0x8, scoped, tag = 'scoped memory for tpu_custom_call.1']
    #allocation5 [shape = 'u8[262144]{0}', space=vmem, size = 0x40000, scoped, tag = 'output window, operand 0']
    %8 = vsyncpa [#allocation4], 0
    %9 = vsyncpa [#allocation3], 0
    %s10 = scalar_lea.sflag [#allocation3], 1
    %11 = vsyncpa %s10, 0
    loop: start=0, step=1, limit=4
    $region2: #{tpu_custom_call.1} parent=1 // loop_pre_header
      _
    $region3: #{tpu_custom_call.1} parent=1 // loop_header
      %s13 = sphi 0, %s17
      %p14 = scmp.ge.s32.totalorder %s13, 4
      %s20 = sphi 0, %s32
      %s21 = sphi 0, %s28
      %s22 = sphi 0, %s20
      %s23 = sphi 0, %s21
      %s24 = sphi 0, %s22
      %s25 = sphi 0, %s23
      %s33 = sphi 0, %s33
      %s35 = sphi 0, %s33
      %s36 = sphi 0, %s35
      %s50 = sphi 0, %s36
      %s58 = sphi 0, %s60
      %s61 = sphi 0, %s58
      %s62 = sphi 0, %s61
      %s78 = sphi 0, %s62
      %s82 = sphi 0, %s82
      %s84 = sphi 0, %s82
      %s85 = sphi 0, %s84
      %s99 = sphi 0, %s85
      %s107 = sphi 0, %s109
      %s110 = sphi 0, %s107
      %s111 = sphi 0, %s110
      %s127 = sphi 0, %s111
    $region4: #{tpu_custom_call.1} parent=1 // loop_header_branch
      %16 = sbr.rel (%p14) target = $region8
    $region5: #{tpu_custom_call.1} parent=1 // loop_body
      %s18 = ssub.s32 %s13, 1
      %s19 = ssub.s32 %s13, 2
      %s26 = sadd.s32 1, %s21
      %p27 = scmp.ge.s32.totalorder %s26, 1
      %s28 = scalar_select %p27, 0, %s26
      %s29 = sadd.s32 1, %s20
      %s30 = scalar_select %p27, %s29, %s20
      %p31 = scmp.ge.s32.totalorder %s30, 2
      %s32 = scalar_select %p31, 0, %s30
      %s34 = sadd.s32 %s33, 1
      %p37 = scmp.eq.s32.totalorder %s13, 1
      %p38 = scmp.ne.s32.totalorder %s33, %s35
      %p39 = scmp.eq.s32.totalorder %s13, 0
      %p40 = por %p38, %p39
      %p41 = scmp.ne.s32.totalorder %s33, %s35
      %p42 = scmp.eq.s32.totalorder %s18, 1
      %p43 = por %p41, %p42
      %p44 = scmp.ne.s32.totalorder %s35, %s36
      %p45 = scmp.eq.s32.totalorder %s18, 0
      %p46 = por %p44, %p45
      %p47 = scmp.ne.s32.totalorder %s35, %s36
      %p48 = scmp.eq.s32.totalorder %s19, 1
      %p49 = por %p47, %p48
      %p51 = scmp.ne.s32.totalorder %s36, %s50
      %p52 = scmp.eq.s32.totalorder %s19, 0
      %p53 = por %p51, %p52
      %s54 = ssub.s32 %s20, %s32
      %s55 = ssub.s32 %s21, %s28
      %s56 = sor.u32 %s54, %s55
      %p57 = scmp.eq.s32.totalorder %s56, 0
      %s59 = sadd.s32 %s58, 1
      %s60 = scalar_select %p57, %s58, %s59
      %p63 = pneg %p57
      %p64 = scmp.eq.s32.totalorder %s13, 1
      %p65 = por %p63, %p64
      %p66 = scmp.ne.s32.totalorder %s58, %s61
      %p67 = scmp.eq.s32.totalorder %s13, 0
      %p68 = por %p66, %p67
      %p69 = scmp.ne.s32.totalorder %s58, %s61
      %p70 = scmp.eq.s32.totalorder %s18, 1
      %p71 = por %p69, %p70
      %p72 = scmp.ne.s32.totalorder %s61, %s62
      %p73 = scmp.eq.s32.totalorder %s18, 0
      %p74 = por %p72, %p73
      %p75 = scmp.ne.s32.totalorder %s61, %s62
      %p76 = scmp.eq.s32.totalorder %s19, 1
      %p77 = por %p75, %p76
      %p79 = scmp.ne.s32.totalorder %s62, %s78
      %p80 = scmp.eq.s32.totalorder %s19, 0
      %p81 = por %p79, %p80
      %s83 = sadd.s32 %s82, 1
      %p86 = scmp.eq.s32.totalorder %s13, 1
      %p87 = scmp.ne.s32.totalorder %s82, %s84
      %p88 = scmp.eq.s32.totalorder %s13, 0
      %p89 = por %p87, %p88
      %p90 = scmp.ne.s32.totalorder %s82, %s84
      %p91 = scmp.eq.s32.totalorder %s18, 1
      %p92 = por %p90, %p91
      %p93 = scmp.ne.s32.totalorder %s84, %s85
      %p94 = scmp.eq.s32.totalorder %s18, 0
      %p95 = por %p93, %p94
      %p96 = scmp.ne.s32.totalorder %s84, %s85
      %p97 = scmp.eq.s32.totalorder %s19, 1
      %p98 = por %p96, %p97
      %p100 = scmp.ne.s32.totalorder %s85, %s99
      %p101 = scmp.eq.s32.totalorder %s19, 0
      %p102 = por %p100, %p101
      %s103 = sadd.s32 %s20, %s21
      %s104 = sadd.s32 %s32, %s28
      %s105 = ssub.s32 %s103, %s104
      %p106 = scmp.eq.s32.totalorder %s105, 0
      %s108 = sadd.s32 %s107, 1
      %s109 = scalar_select %p106, %s107, %s108
      %p112 = pneg %p106
      %p113 = scmp.eq.s32.totalorder %s13, 1
      %p114 = por %p112, %p113
      %p115 = scmp.ne.s32.totalorder %s107, %s110
      %p116 = scmp.eq.s32.totalorder %s13, 0
      %p117 = por %p115, %p116
      %p118 = scmp.ne.s32.totalorder %s107, %s110
      %p119 = scmp.eq.s32.totalorder %s18, 1
      %p120 = por %p118, %p119
      %p121 = scmp.ne.s32.totalorder %s110, %s111
      %p122 = scmp.eq.s32.totalorder %s18, 0
      %p123 = por %p121, %p122
      %p124 = scmp.ne.s32.totalorder %s110, %s111
      %p125 = scmp.eq.s32.totalorder %s19, 1
      %p126 = por %p124, %p125
      %p128 = scmp.ne.s32.totalorder %s111, %s127
      %p129 = scmp.eq.s32.totalorder %s19, 0
      %p130 = por %p128, %p129
      %p131 = scmp.le.s32.totalorder 1, %s13
      %p132 = scmp.lt.s32.totalorder %s13, 3
      %p133 = pnand %p131, %p132
      %p134 = pneg %p133
      // Predicated region
      $region9: #{tpu_custom_call.1} parent=5 // pred_check
        _
      $region10: #{tpu_custom_call.1} parent=5 // pred_check_branch
        %136 = sbr.rel (%p133) target = $region12
      $region11: #{tpu_custom_call.1} parent=5 // pred_region
        %s137 = ssub.s32 %s13, 1
        // Predicated region
        $region13: #{tpu_custom_call.1} parent=11 // pred_check
          %p138 = pneg %p46
        $region14: #{tpu_custom_call.1} parent=11 // pred_check_branch
          %140 = sbr.rel (%p138) target = $region16
        $region15: #{tpu_custom_call.1} parent=11 // pred_region
          %142 = vsyncadd [#allocation4], 0
          %s144 = sshll.u32 %s0, 4
          %s145 = int_to_ptr.vmem [resolvable:$true] %s144
          %147 = dma.vmem_to_smem %s145, 16, [#allocation2], [#allocation4]
        $region16: #{tpu_custom_call.1} parent=11 // pred_fallthru
          _
        // Predicated region
        $region17: #{tpu_custom_call.1} parent=11 // pred_check
          %p148 = pneg %p95
        $region18: #{tpu_custom_call.1} parent=11 // pred_check_branch
          %150 = sbr.rel (%p148) target = $region20
        $region19: #{tpu_custom_call.1} parent=11 // pred_region
          _
        $region20: #{tpu_custom_call.1} parent=11 // pred_fallthru
          _
      $region12: #{tpu_custom_call.1} parent=5 // pred_fallthru
        _
      %p151 = scmp.lt.s32.totalorder %s13, 2
      // Predicated region
      $region21: #{tpu_custom_call.1} parent=5 // pred_check
        %p152 = pneg %p151
      $region22: #{tpu_custom_call.1} parent=5 // pred_check_branch
        %154 = sbr.rel (%p152) target = $region24
      $region23: #{tpu_custom_call.1} parent=5 // pred_region
        // Predicated region
        $region25: #{tpu_custom_call.1} parent=23 // pred_check
          %p155 = pneg %p68
        $region26: #{tpu_custom_call.1} parent=23 // pred_check_branch
          %157 = sbr.rel (%p155) target = $region28
        $region27: #{tpu_custom_call.1} parent=23 // pred_region
          %p158 = scmp.lt.s32.totalorder %s20, 1
          %s159 = scalar_select %p158, %s20, 1
          %p160 = scmp.lt.s32.totalorder %s21, 0
          %s161 = scalar_select %p160, %s21, 0
          %s162 = smul.addr %s161, 54
          %s163 = smul.addr %s159, 54
          %s164 = sadd.s32 %s162, %s163
          %s165 = smul.addr %s164, 8
          %s166 = scalar_lea.vmem %s1, %s165
        $region28: #{tpu_custom_call.1} parent=23 // pred_fallthru
          _
      $region24: #{tpu_custom_call.1} parent=5 // pred_fallthru
        _
      %p167 = scmp.le.s32.totalorder 1, %s13
      %p168 = scmp.lt.s32.totalorder %s13, 3
      %p169 = pnand %p167, %p168
      %p170 = pneg %p169
      // Predicated region
      $region29: #{tpu_custom_call.1} parent=5 // pred_check
        _
      $region30: #{tpu_custom_call.1} parent=5 // pred_check_branch
        %172 = sbr.rel (%p169) target = $region32
      $region31: #{tpu_custom_call.1} parent=5 // pred_region
        %s173 = ssub.s32 %s13, 1
        // Predicated region
        $region33: #{tpu_custom_call.1} parent=31 // pred_check
          %p174 = pneg %p46
        $region34: #{tpu_custom_call.1} parent=31 // pred_check_branch
          %176 = sbr.rel (%p174) target = $region36
        $region35: #{tpu_custom_call.1} parent=31 // pred_region
          %178 = dma.done [#allocation4], 16
        $region36: #{tpu_custom_call.1} parent=31 // pred_fallthru
          _
        %179 = sfence
        %p180 = pneg %p46
        %p181 = pneg %p43
        %p182 = scmp.lt.s32.totalorder %s22, 1
        %s183 = scalar_select %p182, %s22, 1
        %p184 = scmp.lt.s32.totalorder %s23, 0
        %s185 = scalar_select %p184, %s23, 0
        %s186 = smul.addr %s185, 54
        %s187 = smul.addr %s183, 54
        %s188 = sadd.s32 %s186, %s187
        %s189 = smul.addr %s188, 8
        %s190 = scalar_lea.vmem %s1, %s189
        %p191 = pneg %p74
        %p192 = pneg %p71
        %p193 = pneg %p95
        %p194 = pneg %p92
        %p195 = pneg %p123
        %p196 = pneg %p120
        %s197 = sand.u32 %s110, 1
        %s198 = scalar_lea.sflag [#allocation3], %s197
        %s199 = sand.u32 %s110, 1
        %s200 = smul.addr %s199, 256
        %s201 = scalar_lea.vmem [#allocation5], %s200
        %p202 = scmp.lt.s32.totalorder %s22, 1
        %s203 = scalar_select %p202, %s22, 1
        %p204 = scmp.lt.s32.totalorder %s23, 0
        %s205 = scalar_select %p204, %s23, 0
        %s206 = smul.addr %s205, 54
        %s207 = smul.addr %s203, 54
        %s208 = sadd.s32 %s206, %s207
        %s209 = smul.addr %s208, 8
        %s210 = scalar_lea.vmem %s1, %s209
        %s211 = sadd.s32 %s22, %s23
        %s212 = smul.u32 32, %s211
        %v214 = vld [vmem:[%s210] sm:$0xff]
        %v215 = vld [vmem:[%s210 + $0x8] sm:$0xff]
        %v216 = vld [vmem:[%s210 + $0x10] sm:$0x3]
        %v217 = vld [vmem:[%s210 + $0x18] sm:$0xff]
        %v218 = vld [vmem:[%s210 + $0x20] sm:$0xff]
        %v219 = vld [vmem:[%s210 + $0x28] sm:$0x3]
        %v220 = vld [vmem:[%s210 + $0x30] sm:$0xff]
        %v221 = vld [vmem:[%s210 + $0x38] sm:$0xff]
        %v222 = vld [vmem:[%s210 + $0x40] sm:$0x3]
        %v223 = vld [vmem:[%s210 + $0x48] sm:$0xff]
        %v224 = vld [vmem:[%s210 + $0x50] sm:$0xff]
        %v225 = vld [vmem:[%s210 + $0x58] sm:$0x3]
        %v226 = vld [vmem:[%s210 + $0x60] sm:$0xff]
        %v227 = vld [vmem:[%s210 + $0x68] sm:$0xff]
        %v228 = vld [vmem:[%s210 + $0x70] sm:$0x3]
        %v229 = vld [vmem:[%s210 + $0x78] sm:$0xff]
        %v230 = vld [vmem:[%s210 + $0x80] sm:$0xff]
        %v231 = vld [vmem:[%s210 + $0x88] sm:$0x3]
        %v232 = vld [vmem:[%s210 + $0x90] sm:$0xff]
        %v233 = vld [vmem:[%s210 + $0x98] sm:$0xff]
        %v234 = vld [vmem:[%s210 + $0xa0] sm:$0x3]
        %v235 = vld [vmem:[%s210 + $0xa8] sm:$0xff]
        %v236 = vld [vmem:[%s210 + $0xb0] sm:$0xff]
        %v237 = vld [vmem:[%s210 + $0xb8] sm:$0x3]
        %v238 = vld [vmem:[%s210 + $0xc0] sm:$0xff]
        %v239 = vld [vmem:[%s210 + $0xc8] sm:$0xff]
        %v240 = vld [vmem:[%s210 + $0xd0] sm:$0x3]
        %v241 = vld [vmem:[%s210 + $0xd8] sm:$0xff]
        %v242 = vld [vmem:[%s210 + $0xe0] sm:$0xff]
        %v243 = vld [vmem:[%s210 + $0xe8] sm:$0x3]
        %v244 = vld [vmem:[%s210 + $0xf0] sm:$0xff]
        %v245 = vld [vmem:[%s210 + $0xf8] sm:$0xff]
        %v246 = vld [vmem:[%s210 + $0x100] sm:$0x3]
        %v247 = vld [vmem:[%s210 + $0x108] sm:$0xff]
        %v248 = vld [vmem:[%s210 + $0x110] sm:$0xff]
        %v249 = vld [vmem:[%s210 + $0x118] sm:$0x3]
        %v250 = vld [vmem:[%s210 + $0x120] sm:$0xff]
        %v251 = vld [vmem:[%s210 + $0x128] sm:$0xff]
        %v252 = vld [vmem:[%s210 + $0x130] sm:$0x3]
        %v253 = vld [vmem:[%s210 + $0x138] sm:$0xff]
        %v254 = vld [vmem:[%s210 + $0x140] sm:$0xff]
        %v255 = vld [vmem:[%s210 + $0x148] sm:$0x3]
        %v256 = vld [vmem:[%s210 + $0x150] sm:$0xff]
        %v257 = vld [vmem:[%s210 + $0x158] sm:$0xff]
        %v258 = vld [vmem:[%s210 + $0x160] sm:$0x3]
        %v259 = vld [vmem:[%s210 + $0x168] sm:$0xff]
        %v260 = vld [vmem:[%s210 + $0x170] sm:$0xff]
        %v261 = vld [vmem:[%s210 + $0x178] sm:$0x3]
        %v262 = vld [vmem:[%s210 + $0x180] sm:$0xff]
        %v263 = vld [vmem:[%s210 + $0x188] sm:$0xff]
        %v264 = vld [vmem:[%s210 + $0x190] sm:$0x3]
        %v265 = vld [vmem:[%s210 + $0x198] sm:$0xff]
        %v266 = vld [vmem:[%s210 + $0x1a0] sm:$0xff]
        %v267 = vld [vmem:[%s210 + $0x1a8] sm:$0x3]
        %v268 = vmax.f32 %v214, 0.0
        %v269 = vmax.f32 %v215, 0.0
        %v270 = vmax.f32 %v216, 0.0
        %v271 = vmax.f32 %v217, 0.0
        %v272 = vmax.f32 %v218, 0.0
        %v273 = vmax.f32 %v219, 0.0
        %v274 = vmax.f32 %v220, 0.0
        %v275 = vmax.f32 %v221, 0.0
        %v276 = vmax.f32 %v222, 0.0
        %v277 = vmax.f32 %v223, 0.0
        %v278 = vmax.f32 %v224, 0.0
        %v279 = vmax.f32 %v225, 0.0
        %v280 = vmax.f32 %v226, 0.0
        %v281 = vmax.f32 %v227, 0.0
        %v282 = vmax.f32 %v228, 0.0
        %v283 = vmax.f32 %v229, 0.0
        %v284 = vmax.f32 %v230, 0.0
        %v285 = vmax.f32 %v231, 0.0
        %v286 = vmax.f32 %v232, 0.0
        %v287 = vmax.f32 %v233, 0.0
        %v288 = vmax.f32 %v234, 0.0
        %v289 = vmax.f32 %v235, 0.0
        %v290 = vmax.f32 %v236, 0.0
        %v291 = vmax.f32 %v237, 0.0
        %v292 = vmax.f32 %v238, 0.0
        %v293 = vmax.f32 %v239, 0.0
        %v294 = vmax.f32 %v240, 0.0
        %v295 = vmax.f32 %v241, 0.0
        %v296 = vmax.f32 %v242, 0.0
        %v297 = vmax.f32 %v243, 0.0
        %v298 = vmax.f32 %v244, 0.0
        %v299 = vmax.f32 %v245, 0.0
        %v300 = vmax.f32 %v246, 0.0
        %v301 = vmax.f32 %v247, 0.0
        %v302 = vmax.f32 %v248, 0.0
        %v303 = vmax.f32 %v249, 0.0
        %v304 = vmax.f32 %v250, 0.0
        %v305 = vmax.f32 %v251, 0.0
        %v306 = vmax.f32 %v252, 0.0
        %v307 = vmax.f32 %v253, 0.0
        %v308 = vmax.f32 %v254, 0.0
        %v309 = vmax.f32 %v255, 0.0
        %v310 = vmax.f32 %v256, 0.0
        %v311 = vmax.f32 %v257, 0.0
        %v312 = vmax.f32 %v258, 0.0
        %v313 = vmax.f32 %v259, 0.0
        %v314 = vmax.f32 %v260, 0.0
        %v315 = vmax.f32 %v261, 0.0
        %v316 = vmax.f32 %v262, 0.0
        %v317 = vmax.f32 %v263, 0.0
        %v318 = vmax.f32 %v264, 0.0
        %v319 = vmax.f32 %v265, 0.0
        %v320 = vmax.f32 %v266, 0.0
        %v321 = vmax.f32 %v267, 0.0
        %v322 = vmin.f32 %v268, 6.0
        %v323 = vmin.f32 %v269, 6.0
        %v324 = vmin.f32 %v270, 6.0
        %v325 = vmin.f32 %v271, 6.0
        %v326 = vmin.f32 %v272, 6.0
        %v327 = vmin.f32 %v273, 6.0
        %v328 = vmin.f32 %v274, 6.0
        %v329 = vmin.f32 %v275, 6.0
        %v330 = vmin.f32 %v276, 6.0
        %v331 = vmin.f32 %v277, 6.0
        %v332 = vmin.f32 %v278, 6.0
        %v333 = vmin.f32 %v279, 6.0
        %v334 = vmin.f32 %v280, 6.0
        %v335 = vmin.f32 %v281, 6.0
        %v336 = vmin.f32 %v282, 6.0
        %v337 = vmin.f32 %v283, 6.0
        %v338 = vmin.f32 %v284, 6.0
        %v339 = vmin.f32 %v285, 6.0
        %v340 = vmin.f32 %v286, 6.0
        %v341 = vmin.f32 %v287, 6.0
        %v342 = vmin.f32 %v288, 6.0
        %v343 = vmin.f32 %v289, 6.0
        %v344 = vmin.f32 %v290, 6.0
        %v345 = vmin.f32 %v291, 6.0
        %v346 = vmin.f32 %v292, 6.0
        %v347 = vmin.f32 %v293, 6.0
        %v348 = vmin.f32 %v294, 6.0
        %v349 = vmin.f32 %v295, 6.0
        %v350 = vmin.f32 %v296, 6.0
        %v351 = vmin.f32 %v297, 6.0
        %v352 = vmin.f32 %v298, 6.0
        %v353 = vmin.f32 %v299, 6.0
        %v354 = vmin.f32 %v300, 6.0
        %v355 = vmin.f32 %v301, 6.0
        %v356 = vmin.f32 %v302, 6.0
        %v357 = vmin.f32 %v303, 6.0
        %v358 = vmin.f32 %v304, 6.0
        %v359 = vmin.f32 %v305, 6.0
        %v360 = vmin.f32 %v306, 6.0
        %v361 = vmin.f32 %v307, 6.0
        %v362 = vmin.f32 %v308, 6.0
        %v363 = vmin.f32 %v309, 6.0
        %v364 = vmin.f32 %v310, 6.0
        %v365 = vmin.f32 %v311, 6.0
        %v366 = vmin.f32 %v312, 6.0
        %v367 = vmin.f32 %v313, 6.0
        %v368 = vmin.f32 %v314, 6.0
        %v369 = vmin.f32 %v315, 6.0
        %v370 = vmin.f32 %v316, 6.0
        %v371 = vmin.f32 %v317, 6.0
        %v372 = vmin.f32 %v318, 6.0
        %v373 = vmin.f32 %v319, 6.0
        %v374 = vmin.f32 %v320, 6.0
        %v375 = vmin.f32 %v321, 6.0
        %v376 = vmul.f32 %v322, 0.5
        %v377 = vmul.f32 %v323, 0.5
        %v378 = vmul.f32 %v324, 0.5
        %v379 = vmul.f32 %v325, 0.5
        %v380 = vmul.f32 %v326, 0.5
        %v381 = vmul.f32 %v327, 0.5
        %v382 = vmul.f32 %v328, 0.5
        %v383 = vmul.f32 %v329, 0.5
        %v384 = vmul.f32 %v330, 0.5
        %v385 = vmul.f32 %v331, 0.5
        %v386 = vmul.f32 %v332, 0.5
        %v387 = vmul.f32 %v333, 0.5
        %v388 = vmul.f32 %v334, 0.5
        %v389 = vmul.f32 %v335, 0.5
        %v390 = vmul.f32 %v336, 0.5
        %v391 = vmul.f32 %v337, 0.5
        %v392 = vmul.f32 %v338, 0.5
        %v393 = vmul.f32 %v339, 0.5
        %v394 = vmul.f32 %v340, 0.5
        %v395 = vmul.f32 %v341, 0.5
        %v396 = vmul.f32 %v342, 0.5
        %v397 = vmul.f32 %v343, 0.5
        %v398 = vmul.f32 %v344, 0.5
        %v399 = vmul.f32 %v345, 0.5
        %v400 = vmul.f32 %v346, 0.5
        %v401 = vmul.f32 %v347, 0.5
        %v402 = vmul.f32 %v348, 0.5
        %v403 = vmul.f32 %v349, 0.5
        %v404 = vmul.f32 %v350, 0.5
        %v405 = vmul.f32 %v351, 0.5
        %v406 = vmul.f32 %v352, 0.5
        %v407 = vmul.f32 %v353, 0.5
        %v408 = vmul.f32 %v354, 0.5
        %v409 = vmul.f32 %v355, 0.5
        %v410 = vmul.f32 %v356, 0.5
        %v411 = vmul.f32 %v357, 0.5
        %v412 = vmul.f32 %v358, 0.5
        %v413 = vmul.f32 %v359, 0.5
        %v414 = vmul.f32 %v360, 0.5
        %v415 = vmul.f32 %v361, 0.5
        %v416 = vmul.f32 %v362, 0.5
        %v417 = vmul.f32 %v363, 0.5
        %v418 = vmul.f32 %v364, 0.5
        %v419 = vmul.f32 %v365, 0.5
        %v420 = vmul.f32 %v366, 0.5
        %v421 = vmul.f32 %v367, 0.5
        %v422 = vmul.f32 %v368, 0.5
        %v423 = vmul.f32 %v369, 0.5
        %v424 = vmul.f32 %v370, 0.5
        %v425 = vmul.f32 %v371, 0.5
        %v426 = vmul.f32 %v372, 0.5
        %v427 = vmul.f32 %v373, 0.5
        %v428 = vmul.f32 %v374, 0.5
        %v429 = vmul.f32 %v375, 0.5
        %v430 = vround.ne.pseudo %v376
        %v431 = vround.ne.pseudo %v377
        %v432 = vround.ne.pseudo %v378
        %v433 = vround.ne.pseudo %v379
        %v434 = vround.ne.pseudo %v380
        %v435 = vround.ne.pseudo %v381
        %v436 = vround.ne.pseudo %v382
        %v437 = vround.ne.pseudo %v383
        %v438 = vround.ne.pseudo %v384
        %v439 = vround.ne.pseudo %v385
        %v440 = vround.ne.pseudo %v386
        %v441 = vround.ne.pseudo %v387
        %v442 = vround.ne.pseudo %v388
        %v443 = vround.ne.pseudo %v389
        %v444 = vround.ne.pseudo %v390
        %v445 = vround.ne.pseudo %v391
        %v446 = vround.ne.pseudo %v392
        %v447 = vround.ne.pseudo %v393
        %v448 = vround.ne.pseudo %v394
        %v449 = vround.ne.pseudo %v395
        %v450 = vround.ne.pseudo %v396
        %v451 = vround.ne.pseudo %v397
        %v452 = vround.ne.pseudo %v398
        %v453 = vround.ne.pseudo %v399
        %v454 = vround.ne.pseudo %v400
        %v455 = vround.ne.pseudo %v401
        %v456 = vround.ne.pseudo %v402
        %v457 = vround.ne.pseudo %v403
        %v458 = vround.ne.pseudo %v404
        %v459 = vround.ne.pseudo %v405
        %v460 = vround.ne.pseudo %v406
        %v461 = vround.ne.pseudo %v407
        %v462 = vround.ne.pseudo %v408
        %v463 = vround.ne.pseudo %v409
        %v464 = vround.ne.pseudo %v410
        %v465 = vround.ne.pseudo %v411
        %v466 = vround.ne.pseudo %v412
        %v467 = vround.ne.pseudo %v413
        %v468 = vround.ne.pseudo %v414
        %v469 = vround.ne.pseudo %v415
        %v470 = vround.ne.pseudo %v416
        %v471 = vround.ne.pseudo %v417
        %v472 = vround.ne.pseudo %v418
        %v473 = vround.ne.pseudo %v419
        %v474 = vround.ne.pseudo %v420
        %v475 = vround.ne.pseudo %v421
        %v476 = vround.ne.pseudo %v422
        %v477 = vround.ne.pseudo %v423
        %v478 = vround.ne.pseudo %v424
        %v479 = vround.ne.pseudo %v425
        %v480 = vround.ne.pseudo %v426
        %v481 = vround.ne.pseudo %v427
        %v482 = vround.ne.pseudo %v428
        %v483 = vround.ne.pseudo %v429
        %s484 = sld [smem:[#allocation2]]
        %v485 = vstv %s484
        %v486 = vmul.f32 %v430, %v485
        %v487 = vmul.f32 %v431, %v485
        %v488 = vmul.f32 %v432, %v485
        %v489 = vmul.f32 %v433, %v485
        %v490 = vmul.f32 %v434, %v485
        %v491 = vmul.f32 %v435, %v485
        %v492 = vmul.f32 %v436, %v485
        %v493 = vmul.f32 %v437, %v485
        %v494 = vmul.f32 %v438, %v485
        %v495 = vmul.f32 %v439, %v485
        %v496 = vmul.f32 %v440, %v485
        %v497 = vmul.f32 %v441, %v485
        %v498 = vmul.f32 %v442, %v485
        %v499 = vmul.f32 %v443, %v485
        %v500 = vmul.f32 %v444, %v485
        %v501 = vmul.f32 %v445, %v485
        %v502 = vmul.f32 %v446, %v485
        %v503 = vmul.f32 %v447, %v485
        %v504 = vmul.f32 %v448, %v485
        %v505 = vmul.f32 %v449, %v485
        %v506 = vmul.f32 %v450, %v485
        %v507 = vmul.f32 %v451, %v485
        %v508 = vmul.f32 %v452, %v485
        %v509 = vmul.f32 %v453, %v485
        %v510 = vmul.f32 %v454, %v485
        %v511 = vmul.f32 %v455, %v485
        %v512 = vmul.f32 %v456, %v485
        %v513 = vmul.f32 %v457, %v485
        %v514 = vmul.f32 %v458, %v485
        %v515 = vmul.f32 %v459, %v485
        %v516 = vmul.f32 %v460, %v485
        %v517 = vmul.f32 %v461, %v485
        %v518 = vmul.f32 %v462, %v485
        %v519 = vmul.f32 %v463, %v485
        %v520 = vmul.f32 %v464, %v485
        %v521 = vmul.f32 %v465, %v485
        %v522 = vmul.f32 %v466, %v485
        %v523 = vmul.f32 %v467, %v485
        %v524 = vmul.f32 %v468, %v485
        %v525 = vmul.f32 %v469, %v485
        %v526 = vmul.f32 %v470, %v485
        %v527 = vmul.f32 %v471, %v485
        %v528 = vmul.f32 %v472, %v485
        %v529 = vmul.f32 %v473, %v485
        %v530 = vmul.f32 %v474, %v485
        %v531 = vmul.f32 %v475, %v485
        %v532 = vmul.f32 %v476, %v485
        %v533 = vmul.f32 %v477, %v485
        %v534 = vmul.f32 %v478, %v485
        %v535 = vmul.f32 %v479, %v485
        %v536 = vmul.f32 %v480, %v485
        %v537 = vmul.f32 %v481, %v485
        %v538 = vmul.f32 %v482, %v485
        %v539 = vmul.f32 %v483, %v485
        %v540 = vmul.f32 %v322, 2.5
        %v541 = vmul.f32 %v323, 2.5
        %v542 = vmul.f32 %v324, 2.5
        %v543 = vmul.f32 %v325, 2.5
        %v544 = vmul.f32 %v326, 2.5
        %v545 = vmul.f32 %v327, 2.5
        %v546 = vmul.f32 %v328, 2.5
        %v547 = vmul.f32 %v329, 2.5
        %v548 = vmul.f32 %v330, 2.5
        %v549 = vmul.f32 %v331, 2.5
        %v550 = vmul.f32 %v332, 2.5
        %v551 = vmul.f32 %v333, 2.5
        %v552 = vmul.f32 %v334, 2.5
        %v553 = vmul.f32 %v335, 2.5
        %v554 = vmul.f32 %v336, 2.5
        %v555 = vmul.f32 %v337, 2.5
        %v556 = vmul.f32 %v338, 2.5
        %v557 = vmul.f32 %v339, 2.5
        %v558 = vmul.f32 %v340, 2.5
        %v559 = vmul.f32 %v341, 2.5
        %v560 = vmul.f32 %v342, 2.5
        %v561 = vmul.f32 %v343, 2.5
        %v562 = vmul.f32 %v344, 2.5
        %v563 = vmul.f32 %v345, 2.5
        %v564 = vmul.f32 %v346, 2.5
        %v565 = vmul.f32 %v347, 2.5
        %v566 = vmul.f32 %v348, 2.5
        %v567 = vmul.f32 %v349, 2.5
        %v568 = vmul.f32 %v350, 2.5
        %v569 = vmul.f32 %v351, 2.5
        %v570 = vmul.f32 %v352, 2.5
        %v571 = vmul.f32 %v353, 2.5
        %v572 = vmul.f32 %v354, 2.5
        %v573 = vmul.f32 %v355, 2.5
        %v574 = vmul.f32 %v356, 2.5
        %v575 = vmul.f32 %v357, 2.5
        %v576 = vmul.f32 %v358, 2.5
        %v577 = vmul.f32 %v359, 2.5
        %v578 = vmul.f32 %v360, 2.5
        %v579 = vmul.f32 %v361, 2.5
        %v580 = vmul.f32 %v362, 2.5
        %v581 = vmul.f32 %v363, 2.5
        %v582 = vmul.f32 %v364, 2.5
        %v583 = vmul.f32 %v365, 2.5
        %v584 = vmul.f32 %v366, 2.5
        %v585 = vmul.f32 %v367, 2.5
        %v586 = vmul.f32 %v368, 2.5
        %v587 = vmul.f32 %v369, 2.5
        %v588 = vmul.f32 %v370, 2.5
        %v589 = vmul.f32 %v371, 2.5
        %v590 = vmul.f32 %v372, 2.5
        %v591 = vmul.f32 %v373, 2.5
        %v592 = vmul.f32 %v374, 2.5
        %v593 = vmul.f32 %v375, 2.5
        %v594 = vround.ne.pseudo %v540
        %v595 = vround.ne.pseudo %v541
        %v596 = vround.ne.pseudo %v542
        %v597 = vround.ne.pseudo %v543
        %v598 = vround.ne.pseudo %v544
        %v599 = vround.ne.pseudo %v545
        %v600 = vround.ne.pseudo %v546
        %v601 = vround.ne.pseudo %v547
        %v602 = vround.ne.pseudo %v548
        %v603 = vround.ne.pseudo %v549
        %v604 = vround.ne.pseudo %v550
        %v605 = vround.ne.pseudo %v551
        %v606 = vround.ne.pseudo %v552
        %v607 = vround.ne.pseudo %v553
        %v608 = vround.ne.pseudo %v554
        %v609 = vround.ne.pseudo %v555
        %v610 = vround.ne.pseudo %v556
        %v611 = vround.ne.pseudo %v557
        %v612 = vround.ne.pseudo %v558
        %v613 = vround.ne.pseudo %v559
        %v614 = vround.ne.pseudo %v560
        %v615 = vround.ne.pseudo %v561
        %v616 = vround.ne.pseudo %v562
        %v617 = vround.ne.pseudo %v563
        %v618 = vround.ne.pseudo %v564
        %v619 = vround.ne.pseudo %v565
        %v620 = vround.ne.pseudo %v566
        %v621 = vround.ne.pseudo %v567
        %v622 = vround.ne.pseudo %v568
        %v623 = vround.ne.pseudo %v569
        %v624 = vround.ne.pseudo %v570
        %v625 = vround.ne.pseudo %v571
        %v626 = vround.ne.pseudo %v572
        %v627 = vround.ne.pseudo %v573
        %v628 = vround.ne.pseudo %v574
        %v629 = vround.ne.pseudo %v575
        %v630 = vround.ne.pseudo %v576
        %v631 = vround.ne.pseudo %v577
        %v632 = vround.ne.pseudo %v578
        %v633 = vround.ne.pseudo %v579
        %v634 = vround.ne.pseudo %v580
        %v635 = vround.ne.pseudo %v581
        %v636 = vround.ne.pseudo %v582
        %v637 = vround.ne.pseudo %v583
        %v638 = vround.ne.pseudo %v584
        %v639 = vround.ne.pseudo %v585
        %v640 = vround.ne.pseudo %v586
        %v641 = vround.ne.pseudo %v587
        %v642 = vround.ne.pseudo %v588
        %v643 = vround.ne.pseudo %v589
        %v644 = vround.ne.pseudo %v590
        %v645 = vround.ne.pseudo %v591
        %v646 = vround.ne.pseudo %v592
        %v647 = vround.ne.pseudo %v593
        %s648 = sld [smem:[#allocation2 + $0x1]]
        %v649 = vstv %s648
        %v650 = vmul.f32 %v594, %v649
        %v651 = vmul.f32 %v595, %v649
        %v652 = vmul.f32 %v596, %v649
        %v653 = vmul.f32 %v597, %v649
        %v654 = vmul.f32 %v598, %v649
        %v655 = vmul.f32 %v599, %v649
        %v656 = vmul.f32 %v600, %v649
        %v657 = vmul.f32 %v601, %v649
        %v658 = vmul.f32 %v602, %v649
        %v659 = vmul.f32 %v603, %v649
        %v660 = vmul.f32 %v604, %v649
        %v661 = vmul.f32 %v605, %v649
        %v662 = vmul.f32 %v606, %v649
        %v663 = vmul.f32 %v607, %v649
        %v664 = vmul.f32 %v608, %v649
        %v665 = vmul.f32 %v609, %v649
        %v666 = vmul.f32 %v610, %v649
        %v667 = vmul.f32 %v611, %v649
        %v668 = vmul.f32 %v612, %v649
        %v669 = vmul.f32 %v613, %v649
        %v670 = vmul.f32 %v614, %v649
        %v671 = vmul.f32 %v615, %v649
        %v672 = vmul.f32 %v616, %v649
        %v673 = vmul.f32 %v617, %v649
        %v674 = vmul.f32 %v618, %v649
        %v675 = vmul.f32 %v619, %v649
        %v676 = vmul.f32 %v620, %v649
        %v677 = vmul.f32 %v621, %v649
        %v678 = vmul.f32 %v622, %v649
        %v679 = vmul.f32 %v623, %v649
        %v680 = vmul.f32 %v624, %v649
        %v681 = vmul.f32 %v625, %v649
        %v682 = vmul.f32 %v626, %v649
        %v683 = vmul.f32 %v627, %v649
        %v684 = vmul.f32 %v628, %v649
        %v685 = vmul.f32 %v629, %v649
        %v686 = vmul.f32 %v630, %v649
        %v687 = vmul.f32 %v631, %v649
        %v688 = vmul.f32 %v632, %v649
        %v689 = vmul.f32 %v633, %v649
        %v690 = vmul.f32 %v634, %v649
        %v691 = vmul.f32 %v635, %v649
        %v692 = vmul.f32 %v636, %v649
        %v693 = vmul.f32 %v637, %v649
        %v694 = vmul.f32 %v638, %v649
        %v695 = vmul.f32 %v639, %v649
        %v696 = vmul.f32 %v640, %v649
        %v697 = vmul.f32 %v641, %v649
        %v698 = vmul.f32 %v642, %v649
        %v699 = vmul.f32 %v643, %v649
        %v700 = vmul.f32 %v644, %v649
        %v701 = vmul.f32 %v645, %v649
        %v702 = vmul.f32 %v646, %v649
        %v703 = vmul.f32 %v647, %v649
        %v704 = vadd.f32 %v486, %v650
        %v705 = vadd.f32 %v487, %v651
        %v706 = vadd.f32 %v488, %v652
        %v707 = vadd.f32 %v489, %v653
        %v708 = vadd.f32 %v490, %v654
        %v709 = vadd.f32 %v491, %v655
        %v710 = vadd.f32 %v492, %v656
        %v711 = vadd.f32 %v493, %v657
        %v712 = vadd.f32 %v494, %v658
        %v713 = vadd.f32 %v495, %v659
        %v714 = vadd.f32 %v496, %v660
        %v715 = vadd.f32 %v497, %v661
        %v716 = vadd.f32 %v498, %v662
        %v717 = vadd.f32 %v499, %v663
        %v718 = vadd.f32 %v500, %v664
        %v719 = vadd.f32 %v501, %v665
        %v720 = vadd.f32 %v502, %v666
        %v721 = vadd.f32 %v503, %v667
        %v722 = vadd.f32 %v504, %v668
        %v723 = vadd.f32 %v505, %v669
        %v724 = vadd.f32 %v506, %v670
        %v725 = vadd.f32 %v507, %v671
        %v726 = vadd.f32 %v508, %v672
        %v727 = vadd.f32 %v509, %v673
        %v728 = vadd.f32 %v510, %v674
        %v729 = vadd.f32 %v511, %v675
        %v730 = vadd.f32 %v512, %v676
        %v731 = vadd.f32 %v513, %v677
        %v732 = vadd.f32 %v514, %v678
        %v733 = vadd.f32 %v515, %v679
        %v734 = vadd.f32 %v516, %v680
        %v735 = vadd.f32 %v517, %v681
        %v736 = vadd.f32 %v518, %v682
        %v737 = vadd.f32 %v519, %v683
        %v738 = vadd.f32 %v520, %v684
        %v739 = vadd.f32 %v521, %v685
        %v740 = vadd.f32 %v522, %v686
        %v741 = vadd.f32 %v523, %v687
        %v742 = vadd.f32 %v524, %v688
        %v743 = vadd.f32 %v525, %v689
        %v744 = vadd.f32 %v526, %v690
        %v745 = vadd.f32 %v527, %v691
        %v746 = vadd.f32 %v528, %v692
        %v747 = vadd.f32 %v529, %v693
        %v748 = vadd.f32 %v530, %v694
        %v749 = vadd.f32 %v531, %v695
        %v750 = vadd.f32 %v532, %v696
        %v751 = vadd.f32 %v533, %v697
        %v752 = vadd.f32 %v534, %v698
        %v753 = vadd.f32 %v535, %v699
        %v754 = vadd.f32 %v536, %v700
        %v755 = vadd.f32 %v537, %v701
        %v756 = vadd.f32 %v538, %v702
        %v757 = vadd.f32 %v539, %v703
        %v758 = vpack.c.bf16 %v704, %v704
        %v759 = vpack.c.bf16 %v705, %v705
        %v760 = vpack.c.bf16 %v706, %v706
        %v761 = vpack.c.bf16 %v707, %v707
        %v762 = vpack.c.bf16 %v708, %v708
        %v763 = vpack.c.bf16 %v709, %v709
        %v764 = vpack.c.bf16 %v710, %v710
        %v765 = vpack.c.bf16 %v711, %v711
        %v766 = vpack.c.bf16 %v712, %v712
        %v767 = vpack.c.bf16 %v713, %v713
        %v768 = vpack.c.bf16 %v714, %v714
        %v769 = vpack.c.bf16 %v715, %v715
        %v770 = vpack.c.bf16 %v716, %v716
        %v771 = vpack.c.bf16 %v717, %v717
        %v772 = vpack.c.bf16 %v718, %v718
        %v773 = vpack.c.bf16 %v719, %v719
        %v774 = vpack.c.bf16 %v720, %v720
        %v775 = vpack.c.bf16 %v721, %v721
        %v776 = vpack.c.bf16 %v722, %v722
        %v777 = vpack.c.bf16 %v723, %v723
        %v778 = vpack.c.bf16 %v724, %v724
        %v779 = vpack.c.bf16 %v725, %v725
        %v780 = vpack.c.bf16 %v726, %v726
        %v781 = vpack.c.bf16 %v727, %v727
        %v782 = vpack.c.bf16 %v728, %v728
        %v783 = vpack.c.bf16 %v729, %v729
        %v784 = vpack.c.bf16 %v730, %v730
        %v785 = vpack.c.bf16 %v731, %v731
        %v786 = vpack.c.bf16 %v732, %v732
        %v787 = vpack.c.bf16 %v733, %v733
        %v788 = vpack.c.bf16 %v734, %v734
        %v789 = vpack.c.bf16 %v735, %v735
        %v790 = vpack.c.bf16 %v736, %v736
        %v791 = vpack.c.bf16 %v737, %v737
        %v792 = vpack.c.bf16 %v738, %v738
        %v793 = vpack.c.bf16 %v739, %v739
        %v794 = vpack.c.bf16 %v740, %v740
        %v795 = vpack.c.bf16 %v741, %v741
        %v796 = vpack.c.bf16 %v742, %v742
        %v797 = vpack.c.bf16 %v743, %v743
        %v798 = vpack.c.bf16 %v744, %v744
        %v799 = vpack.c.bf16 %v745, %v745
        %v800 = vpack.c.bf16 %v746, %v746
        %v801 = vpack.c.bf16 %v747, %v747
        %v802 = vpack.c.bf16 %v748, %v748
        %v803 = vpack.c.bf16 %v749, %v749
        %v804 = vpack.c.bf16 %v750, %v750
        %v805 = vpack.c.bf16 %v751, %v751
        %v806 = vpack.c.bf16 %v752, %v752
        %v807 = vpack.c.bf16 %v753, %v753
        %v808 = vpack.c.bf16 %v754, %v754
        %v809 = vpack.c.bf16 %v755, %v755
        %v810 = vpack.c.bf16 %v756, %v756
        %v811 = vpack.c.bf16 %v757, %v757
        %vm812 = vsmask.f32 3328
        %vm813 = vsmask.f32 7440
        %vm814 = vmor %vm812, %vm813
        %v816 = vshrl.u32 %v758, 16
        %v818 = vrot.slane %v816, 4
        %v819 = vshll.u32 %v758, 16
        %v821 = vrot.slane %v819, 5
        %v822 = vor.u32 %v818, %v821
        %v823 = vrot.slane %v822, 4
        %v825 = vshll.u32 %v759, 16
        %v827 = vrot.slane %v825, 5
        %v828 = vsel %vm814, %v823, %v827
        %v829 = vshrl.u32 %v759, 16
        %v831 = vrot.slane %v829, 4
        %v832 = vor.u32 %v831, %v827
        %v833 = vrot.slane %v832, 4
        %v835 = vshll.u32 %v760, 16
        %v837 = vrot.slane %v835, 5
        %v838 = vsel %vm814, %v833, %v837
        %v840 = vshrl.u32 %v761, 16
        %v842 = vrot.slane %v840, 4
        %v843 = vshll.u32 %v761, 16
        %v845 = vrot.slane %v843, 5
        %v846 = vor.u32 %v842, %v845
        %v847 = vrot.slane %v846, 4
        %v849 = vshll.u32 %v762, 16
        %v851 = vrot.slane %v849, 5
        %v852 = vsel %vm814, %v847, %v851
        %v853 = vshrl.u32 %v762, 16
        %v855 = vrot.slane %v853, 4
        %v856 = vor.u32 %v855, %v851
        %v857 = vrot.slane %v856, 4
        %v859 = vshll.u32 %v763, 16
        %v861 = vrot.slane %v859, 5
        %v862 = vsel %vm814, %v857, %v861
        %v864 = vshrl.u32 %v764, 16
        %v866 = vrot.slane %v864, 4
        %v867 = vshll.u32 %v764, 16
        %v869 = vrot.slane %v867, 5
        %v870 = vor.u32 %v866, %v869
        %v871 = vrot.slane %v870, 4
        %v873 = vshll.u32 %v765, 16
        %v875 = vrot.slane %v873, 5
        %v876 = vsel %vm814, %v871, %v875
        %v877 = vshrl.u32 %v765, 16
        %v879 = vrot.slane %v877, 4
        %v880 = vor.u32 %v879, %v875
        %v881 = vrot.slane %v880, 4
        %v883 = vshll.u32 %v766, 16
        %v885 = vrot.slane %v883, 5
        %v886 = vsel %vm814, %v881, %v885
        %v888 = vshrl.u32 %v767, 16
        %v890 = vrot.slane %v888, 4
        %v891 = vshll.u32 %v767, 16
        %v893 = vrot.slane %v891, 5
        %v894 = vor.u32 %v890, %v893
        %v895 = vrot.slane %v894, 4
        %v897 = vshll.u32 %v768, 16
        %v899 = vrot.slane %v897, 5
        %v900 = vsel %vm814, %v895, %v899
        %v901 = vshrl.u32 %v768, 16
        %v903 = vrot.slane %v901, 4
        %v904 = vor.u32 %v903, %v899
        %v905 = vrot.slane %v904, 4
        %v907 = vshll.u32 %v769, 16
        %v909 = vrot.slane %v907, 5
        %v910 = vsel %vm814, %v905, %v909
        %v912 = vshrl.u32 %v770, 16
        %v914 = vrot.slane %v912, 4
        %v915 = vshll.u32 %v770, 16
        %v917 = vrot.slane %v915, 5
        %v918 = vor.u32 %v914, %v917
        %v919 = vrot.slane %v918, 4
        %v921 = vshll.u32 %v771, 16
        %v923 = vrot.slane %v921, 5
        %v924 = vsel %vm814, %v919, %v923
        %v925 = vshrl.u32 %v771, 16
        %v927 = vrot.slane %v925, 4
        %v928 = vor.u32 %v927, %v923
        %v929 = vrot.slane %v928, 4
        %v931 = vshll.u32 %v772, 16
        %v933 = vrot.slane %v931, 5
        %v934 = vsel %vm814, %v929, %v933
        %v936 = vshrl.u32 %v773, 16
        %v938 = vrot.slane %v936, 4
        %v939 = vshll.u32 %v773, 16
        %v941 = vrot.slane %v939, 5
        %v942 = vor.u32 %v938, %v941
        %v943 = vrot.slane %v942, 4
        %v945 = vshll.u32 %v774, 16
        %v947 = vrot.slane %v945, 5
        %v948 = vsel %vm814, %v943, %v947
        %v949 = vshrl.u32 %v774, 16
        %v951 = vrot.slane %v949, 4
        %v952 = vor.u32 %v951, %v947
        %v953 = vrot.slane %v952, 4
        %v955 = vshll.u32 %v775, 16
        %v957 = vrot.slane %v955, 5
        %v958 = vsel %vm814, %v953, %v957
        %v960 = vshrl.u32 %v776, 16
        %v962 = vrot.slane %v960, 4
        %v963 = vshll.u32 %v776, 16
        %v965 = vrot.slane %v963, 5
        %v966 = vor.u32 %v962, %v965
        %v967 = vrot.slane %v966, 4
        %v969 = vshll.u32 %v777, 16
        %v971 = vrot.slane %v969, 5
        %v972 = vsel %vm814, %v967, %v971
        %v973 = vshrl.u32 %v777, 16
        %v975 = vrot.slane %v973, 4
        %v976 = vor.u32 %v975, %v971
        %v977 = vrot.slane %v976, 4
        %v979 = vshll.u32 %v778, 16
        %v981 = vrot.slane %v979, 5
        %v982 = vsel %vm814, %v977, %v981
        %v984 = vshrl.u32 %v779, 16
        %v986 = vrot.slane %v984, 4
        %v987 = vshll.u32 %v779, 16
        %v989 = vrot.slane %v987, 5
        %v990 = vor.u32 %v986, %v989
        %v991 = vrot.slane %v990, 4
        %v993 = vshll.u32 %v780, 16
        %v995 = vrot.slane %v993, 5
        %v996 = vsel %vm814, %v991, %v995
        %v997 = vshrl.u32 %v780, 16
        %v999 = vrot.slane %v997, 4
        %v1000 = vor.u32 %v999, %v995
        %v1001 = vrot.slane %v1000, 4
        %v1003 = vshll.u32 %v781, 16
        %v1005 = vrot.slane %v1003, 5
        %v1006 = vsel %vm814, %v1001, %v1005
        %v1008 = vshrl.u32 %v782, 16
        %v1010 = vrot.slane %v1008, 4
        %v1011 = vshll.u32 %v782, 16
        %v1013 = vrot.slane %v1011, 5
        %v1014 = vor.u32 %v1010, %v1013
        %v1015 = vrot.slane %v1014, 4
        %v1017 = vshll.u32 %v783, 16
        %v1019 = vrot.slane %v1017, 5
        %v1020 = vsel %vm814, %v1015, %v1019
        %v1021 = vshrl.u32 %v783, 16
        %v1023 = vrot.slane %v1021, 4
        %v1024 = vor.u32 %v1023, %v1019
        %v1025 = vrot.slane %v1024, 4
        %v1027 = vshll.u32 %v784, 16
        %v1029 = vrot.slane %v1027, 5
        %v1030 = vsel %vm814, %v1025, %v1029
        %v1032 = vshrl.u32 %v785, 16
        %v1034 = vrot.slane %v1032, 4
        %v1035 = vshll.u32 %v785, 16
        %v1037 = vrot.slane %v1035, 5
        %v1038 = vor.u32 %v1034, %v1037
        %v1039 = vrot.slane %v1038, 4
        %v1041 = vshll.u32 %v786, 16
        %v1043 = vrot.slane %v1041, 5
        %v1044 = vsel %vm814, %v1039, %v1043
        %v1045 = vshrl.u32 %v786, 16
        %v1047 = vrot.slane %v1045, 4
        %v1048 = vor.u32 %v1047, %v1043
        %v1049 = vrot.slane %v1048, 4
        %v1051 = vshll.u32 %v787, 16
        %v1053 = vrot.slane %v1051, 5
        %v1054 = vsel %vm814, %v1049, %v1053
        %v1056 = vshrl.u32 %v788, 16
        %v1058 = vrot.slane %v1056, 4
        %v1059 = vshll.u32 %v788, 16
        %v1061 = vrot.slane %v1059, 5
        %v1062 = vor.u32 %v1058, %v1061
        %v1063 = vrot.slane %v1062, 4
        %v1065 = vshll.u32 %v789, 16
        %v1067 = vrot.slane %v1065, 5
        %v1068 = vsel %vm814, %v1063, %v1067
        %v1069 = vshrl.u32 %v789, 16
        %v1071 = vrot.slane %v1069, 4
        %v1072 = vor.u32 %v1071, %v1067
        %v1073 = vrot.slane %v1072, 4
        %v1075 = vshll.u32 %v790, 16
        %v1077 = vrot.slane %v1075, 5
        %v1078 = vsel %vm814, %v1073, %v1077
        %v1080 = vshrl.u32 %v791, 16
        %v1082 = vrot.slane %v1080, 4
        %v1083 = vshll.u32 %v791, 16
        %v1085 = vrot.slane %v1083, 5
        %v1086 = vor.u32 %v1082, %v1085
        %v1087 = vrot.slane %v1086, 4
        %v1089 = vshll.u32 %v792, 16
        %v1091 = vrot.slane %v1089, 5
        %v1092 = vsel %vm814, %v1087, %v1091
        %v1093 = vshrl.u32 %v792, 16
        %v1095 = vrot.slane %v1093, 4
        %v1096 = vor.u32 %v1095, %v1091
        %v1097 = vrot.slane %v1096, 4
        %v1099 = vshll.u32 %v793, 16
        %v1101 = vrot.slane %v1099, 5
        %v1102 = vsel %vm814, %v1097, %v1101
        %v1104 = vshrl.u32 %v794, 16
        %v1106 = vrot.slane %v1104, 4
        %v1107 = vshll.u32 %v794, 16
        %v1109 = vrot.slane %v1107, 5
        %v1110 = vor.u32 %v1106, %v1109
        %v1111 = vrot.slane %v1110, 4
        %v1113 = vshll.u32 %v795, 16
        %v1115 = vrot.slane %v1113, 5
        %v1116 = vsel %vm814, %v1111, %v1115
        %v1117 = vshrl.u32 %v795, 16
        %v1119 = vrot.slane %v1117, 4
        %v1120 = vor.u32 %v1119, %v1115
        %v1121 = vrot.slane %v1120, 4
        %v1123 = vshll.u32 %v796, 16
        %v1125 = vrot.slane %v1123, 5
        %v1126 = vsel %vm814, %v1121, %v1125
        %v1128 = vshrl.u32 %v797, 16
        %v1130 = vrot.slane %v1128, 4
        %v1131 = vshll.u32 %v797, 16
        %v1133 = vrot.slane %v1131, 5
        %v1134 = vor.u32 %v1130, %v1133
        %v1135 = vrot.slane %v1134, 4
        %v1137 = vshll.u32 %v798, 16
        %v1139 = vrot.slane %v1137, 5
        %v1140 = vsel %vm814, %v1135, %v1139
        %v1141 = vshrl.u32 %v798, 16
        %v1143 = vrot.slane %v1141, 4
        %v1144 = vor.u32 %v1143, %v1139
        %v1145 = vrot.slane %v1144, 4
        %v1147 = vshll.u32 %v799, 16
        %v1149 = vrot.slane %v1147, 5
        %v1150 = vsel %vm814, %v1145, %v1149
        %v1152 = vshrl.u32 %v800, 16
        %v1154 = vrot.slane %v1152, 4
        %v1155 = vshll.u32 %v800, 16
        %v1157 = vrot.slane %v1155, 5
        %v1158 = vor.u32 %v1154, %v1157
        %v1159 = vrot.slane %v1158, 4
        %v1161 = vshll.u32 %v801, 16
        %v1163 = vrot.slane %v1161, 5
        %v1164 = vsel %vm814, %v1159, %v1163
        %v1165 = vshrl.u32 %v801, 16
        %v1167 = vrot.slane %v1165, 4
        %v1168 = vor.u32 %v1167, %v1163
        %v1169 = vrot.slane %v1168, 4
        %v1171 = vshll.u32 %v802, 16
        %v1173 = vrot.slane %v1171, 5
        %v1174 = vsel %vm814, %v1169, %v1173
        %v1176 = vshrl.u32 %v803, 16
        %v1178 = vrot.slane %v1176, 4
        %v1179 = vshll.u32 %v803, 16
        %v1181 = vrot.slane %v1179, 5
        %v1182 = vor.u32 %v1178, %v1181
        %v1183 = vrot.slane %v1182, 4
        %v1185 = vshll.u32 %v804, 16
        %v1187 = vrot.slane %v1185, 5
        %v1188 = vsel %vm814, %v1183, %v1187
        %v1189 = vshrl.u32 %v804, 16
        %v1191 = vrot.slane %v1189, 4
        %v1192 = vor.u32 %v1191, %v1187
        %v1193 = vrot.slane %v1192, 4
        %v1195 = vshll.u32 %v805, 16
        %v1197 = vrot.slane %v1195, 5
        %v1198 = vsel %vm814, %v1193, %v1197
        %vm1247 = vcmask 1042432
        %vm1248 = vcmask 1046532
        %vm1249 = vmor %vm1247, %vm1248
        %v1250 = vrot.slane %v758, 5
        %v1251 = vrot.slane %v1250, 4
        %v1252 = vrot.slane %v759, 5
        %v1253 = vsel %vm1249, %v1251, %v1252
        %v1254 = vrot.slane %v1252, 4
        %v1255 = vrot.slane %v760, 5
        %v1256 = vsel %vm1249, %v1254, %v1255
        %v1257 = vrot.slane %v761, 5
        %v1258 = vrot.slane %v1257, 4
        %v1259 = vrot.slane %v762, 5
        %v1260 = vsel %vm1249, %v1258, %v1259
        %v1261 = vrot.slane %v1259, 4
        %v1262 = vrot.slane %v763, 5
        %v1263 = vsel %vm1249, %v1261, %v1262
        %v1264 = vrot.slane %v764, 5
        %v1265 = vrot.slane %v1264, 4
        %v1266 = vrot.slane %v765, 5
        %v1267 = vsel %vm1249, %v1265, %v1266
        %v1268 = vrot.slane %v1266, 4
        %v1269 = vrot.slane %v766, 5
        %v1270 = vsel %vm1249, %v1268, %v1269
        %v1271 = vrot.slane %v767, 5
        %v1272 = vrot.slane %v1271, 4
        %v1273 = vrot.slane %v768, 5
        %v1274 = vsel %vm1249, %v1272, %v1273
        %v1275 = vrot.slane %v1273, 4
        %v1276 = vrot.slane %v769, 5
        %v1277 = vsel %vm1249, %v1275, %v1276
        %v1278 = vrot.slane %v770, 5
        %v1279 = vrot.slane %v1278, 4
        %v1280 = vrot.slane %v771, 5
        %v1281 = vsel %vm1249, %v1279, %v1280
        %v1282 = vrot.slane %v1280, 4
        %v1283 = vrot.slane %v772, 5
        %v1284 = vsel %vm1249, %v1282, %v1283
        %v1285 = vrot.slane %v773, 5
        %v1286 = vrot.slane %v1285, 4
        %v1287 = vrot.slane %v774, 5
        %v1288 = vsel %vm1249, %v1286, %v1287
        %v1289 = vrot.slane %v1287, 4
        %v1290 = vrot.slane %v775, 5
        %v1291 = vsel %vm1249, %v1289, %v1290
        %v1292 = vrot.slane %v776, 5
        %v1293 = vrot.slane %v1292, 4
        %v1294 = vrot.slane %v777, 5
        %v1295 = vsel %vm1249, %v1293, %v1294
        %v1296 = vrot.slane %v1294, 4
        %v1297 = vrot.slane %v778, 5
        %v1298 = vsel %vm1249, %v1296, %v1297
        %v1299 = vrot.slane %v779, 5
        %v1300 = vrot.slane %v1299, 4
        %v1301 = vrot.slane %v780, 5
        %v1302 = vsel %vm1249, %v1300, %v1301
        %v1303 = vrot.slane %v1301, 4
        %v1304 = vrot.slane %v781, 5
        %v1305 = vsel %vm1249, %v1303, %v1304
        %v1306 = vrot.slane %v782, 5
        %v1307 = vrot.slane %v1306, 4
        %v1308 = vrot.slane %v783, 5
        %v1309 = vsel %vm1249, %v1307, %v1308
        %v1310 = vrot.slane %v1308, 4
        %v1311 = vrot.slane %v784, 5
        %v1312 = vsel %vm1249, %v1310, %v1311
        %v1313 = vrot.slane %v785, 5
        %v1314 = vrot.slane %v1313, 4
        %v1315 = vrot.slane %v786, 5
        %v1316 = vsel %vm1249, %v1314, %v1315
        %v1317 = vrot.slane %v1315, 4
        %v1318 = vrot.slane %v787, 5
        %v1319 = vsel %vm1249, %v1317, %v1318
        %v1320 = vrot.slane %v788, 5
        %v1321 = vrot.slane %v1320, 4
        %v1322 = vrot.slane %v789, 5
        %v1323 = vsel %vm1249, %v1321, %v1322
        %v1324 = vrot.slane %v1322, 4
        %v1325 = vrot.slane %v790, 5
        %v1326 = vsel %vm1249, %v1324, %v1325
        %v1327 = vrot.slane %v791, 5
        %v1328 = vrot.slane %v1327, 4
        %v1329 = vrot.slane %v792, 5
        %v1330 = vsel %vm1249, %v1328, %v1329
        %v1331 = vrot.slane %v1329, 4
        %v1332 = vrot.slane %v793, 5
        %v1333 = vsel %vm1249, %v1331, %v1332
        %v1334 = vrot.slane %v794, 5
        %v1335 = vrot.slane %v1334, 4
        %v1336 = vrot.slane %v795, 5
        %v1337 = vsel %vm1249, %v1335, %v1336
        %v1338 = vrot.slane %v1336, 4
        %v1339 = vrot.slane %v796, 5
        %v1340 = vsel %vm1249, %v1338, %v1339
        %v1341 = vrot.slane %v797, 5
        %v1342 = vrot.slane %v1341, 4
        %v1343 = vrot.slane %v798, 5
        %v1344 = vsel %vm1249, %v1342, %v1343
        %v1345 = vrot.slane %v1343, 4
        %v1346 = vrot.slane %v799, 5
        %v1347 = vsel %vm1249, %v1345, %v1346
        %v1348 = vrot.slane %v800, 5
        %v1349 = vrot.slane %v1348, 4
        %v1350 = vrot.slane %v801, 5
        %v1351 = vsel %vm1249, %v1349, %v1350
        %v1352 = vrot.slane %v1350, 4
        %v1353 = vrot.slane %v802, 5
        %v1354 = vsel %vm1249, %v1352, %v1353
        %v1355 = vrot.slane %v803, 5
        %v1356 = vrot.slane %v1355, 4
        %v1357 = vrot.slane %v804, 5
        %v1358 = vsel %vm1249, %v1356, %v1357
        %v1359 = vrot.slane %v1357, 4
        %v1360 = vrot.slane %v805, 5
        %v1361 = vsel %vm1249, %v1359, %v1360
        %v1363 = vshrl.u32 %v806, 16
        %v1365 = vrot.slane %v1363, 4
        %v1366 = vshll.u32 %v806, 16
        %v1368 = vrot.slane %v1366, 5
        %v1369 = vor.u32 %v1365, %v1368
        %v1370 = vrot.slane %v1369, 4
        %v1372 = vshll.u32 %v807, 16
        %v1374 = vrot.slane %v1372, 5
        %v1375 = vsel %vm814, %v1370, %v1374
        %v1376 = vshrl.u32 %v807, 16
        %v1378 = vrot.slane %v1376, 4
        %v1379 = vor.u32 %v1378, %v1374
        %v1380 = vrot.slane %v1379, 4
        %v1382 = vshll.u32 %v808, 16
        %v1384 = vrot.slane %v1382, 5
        %v1385 = vsel %vm814, %v1380, %v1384
        %v1389 = vrot.slane %v806, 5
        %v1390 = vrot.slane %v1389, 4
        %v1391 = vrot.slane %v807, 5
        %v1392 = vsel %vm1249, %v1390, %v1391
        %v1393 = vrot.slane %v1391, 4
        %v1394 = vrot.slane %v808, 5
        %v1395 = vsel %vm1249, %v1393, %v1394
        %v1397 = vshrl.u32 %v809, 16
        %v1399 = vrot.slane %v1397, 4
        %v1400 = vshll.u32 %v809, 16
        %v1402 = vrot.slane %v1400, 5
        %v1403 = vor.u32 %v1399, %v1402
        %v1404 = vrot.slane %v1403, 4
        %v1406 = vshll.u32 %v810, 16
        %v1408 = vrot.slane %v1406, 5
        %v1409 = vsel %vm814, %v1404, %v1408
        %v1410 = vshrl.u32 %v810, 16
        %v1412 = vrot.slane %v1410, 4
        %v1413 = vor.u32 %v1412, %v1408
        %v1414 = vrot.slane %v1413, 4
        %v1416 = vshll.u32 %v811, 16
        %v1418 = vrot.slane %v1416, 5
        %v1419 = vsel %vm814, %v1414, %v1418
        %v1423 = vrot.slane %v809, 5
        %v1424 = vrot.slane %v1423, 4
        %v1425 = vrot.slane %v810, 5
        %v1426 = vsel %vm1249, %v1424, %v1425
        %v1427 = vrot.slane %v1425, 4
        %v1428 = vrot.slane %v811, 5
        %v1429 = vsel %vm1249, %v1427, %v1428
        %v1430 = vunpack.c.l.b16 %v758
        %v1431 = vunpack.c.l.b16 %v759
        %v1432 = vunpack.c.l.b16 %v761
        %v1433 = vunpack.c.l.b16 %v762
        %v1434 = vunpack.c.l.b16 %v764
        %v1435 = vunpack.c.l.b16 %v765
        %v1436 = vunpack.c.l.b16 %v767
        %v1437 = vunpack.c.l.b16 %v768
        %v1438 = vunpack.c.l.b16 %v770
        %v1439 = vunpack.c.l.b16 %v771
        %v1440 = vunpack.c.l.b16 %v773
        %v1441 = vunpack.c.l.b16 %v774
        %v1442 = vunpack.c.l.b16 %v776
        %v1443 = vunpack.c.l.b16 %v777
        %v1444 = vunpack.c.l.b16 %v779
        %v1445 = vunpack.c.l.b16 %v780
        %v1446 = vunpack.c.l.b16 %v782
        %v1447 = vunpack.c.l.b16 %v783
        %v1448 = vunpack.c.l.b16 %v785
        %v1449 = vunpack.c.l.b16 %v786
        %v1450 = vunpack.c.l.b16 %v788
        %v1451 = vunpack.c.l.b16 %v789
        %v1452 = vunpack.c.l.b16 %v791
        %v1453 = vunpack.c.l.b16 %v792
        %v1454 = vunpack.c.l.b16 %v794
        %v1455 = vunpack.c.l.b16 %v795
        %v1456 = vunpack.c.l.b16 %v797
        %v1457 = vunpack.c.l.b16 %v798
        %v1458 = vunpack.c.l.b16 %v800
        %v1459 = vunpack.c.l.b16 %v801
        %v1460 = vunpack.c.l.b16 %v803
        %v1461 = vunpack.c.l.b16 %v804
        %v1462 = vpack.c.b16 %v1431, %v1430
        %v1463 = vpack.c.b16 %v1433, %v1432
        %v1464 = vpack.c.b16 %v1435, %v1434
        %v1465 = vpack.c.b16 %v1437, %v1436
        %v1466 = vpack.c.b16 %v1439, %v1438
        %v1467 = vpack.c.b16 %v1441, %v1440
        %v1468 = vpack.c.b16 %v1443, %v1442
        %v1469 = vpack.c.b16 %v1445, %v1444
        %v1470 = vpack.c.b16 %v1447, %v1446
        %v1471 = vpack.c.b16 %v1449, %v1448
        %v1472 = vpack.c.b16 %v1451, %v1450
        %v1473 = vpack.c.b16 %v1453, %v1452
        %v1474 = vpack.c.b16 %v1455, %v1454
        %v1475 = vpack.c.b16 %v1457, %v1456
        %v1476 = vpack.c.b16 %v1459, %v1458
        %v1477 = vpack.c.b16 %v1461, %v1460
        %v1478 = vunpack.c.l.b16 %v828
        %v1479 = vunpack.c.l.b16 %v838
        %v1480 = vunpack.c.l.b16 %v852
        %v1481 = vunpack.c.l.b16 %v862
        %v1482 = vunpack.c.l.b16 %v876
        %v1483 = vunpack.c.l.b16 %v886
        %v1484 = vunpack.c.l.b16 %v900
        %v1485 = vunpack.c.l.b16 %v910
        %v1486 = vunpack.c.l.b16 %v924
        %v1487 = vunpack.c.l.b16 %v934
        %v1488 = vunpack.c.l.b16 %v948
        %v1489 = vunpack.c.l.b16 %v958
        %v1490 = vunpack.c.l.b16 %v972
        %v1491 = vunpack.c.l.b16 %v982
        %v1492 = vunpack.c.l.b16 %v996
        %v1493 = vunpack.c.l.b16 %v1006
        %v1494 = vunpack.c.l.b16 %v1020
        %v1495 = vunpack.c.l.b16 %v1030
        %v1496 = vunpack.c.l.b16 %v1044
        %v1497 = vunpack.c.l.b16 %v1054
        %v1498 = vunpack.c.l.b16 %v1068
        %v1499 = vunpack.c.l.b16 %v1078
        %v1500 = vunpack.c.l.b16 %v1092
        %v1501 = vunpack.c.l.b16 %v1102
        %v1502 = vunpack.c.l.b16 %v1116
        %v1503 = vunpack.c.l.b16 %v1126
        %v1504 = vunpack.c.l.b16 %v1140
        %v1505 = vunpack.c.l.b16 %v1150
        %v1506 = vunpack.c.l.b16 %v1164
        %v1507 = vunpack.c.l.b16 %v1174
        %v1508 = vunpack.c.l.b16 %v1188
        %v1509 = vunpack.c.l.b16 %v1198
        %v1510 = vpack.c.b16 %v1479, %v1478
        %v1511 = vpack.c.b16 %v1481, %v1480
        %v1512 = vpack.c.b16 %v1483, %v1482
        %v1513 = vpack.c.b16 %v1485, %v1484
        %v1514 = vpack.c.b16 %v1487, %v1486
        %v1515 = vpack.c.b16 %v1489, %v1488
        %v1516 = vpack.c.b16 %v1491, %v1490
        %v1517 = vpack.c.b16 %v1493, %v1492
        %v1518 = vpack.c.b16 %v1495, %v1494
        %v1519 = vpack.c.b16 %v1497, %v1496
        %v1520 = vpack.c.b16 %v1499, %v1498
        %v1521 = vpack.c.b16 %v1501, %v1500
        %v1522 = vpack.c.b16 %v1503, %v1502
        %v1523 = vpack.c.b16 %v1505, %v1504
        %v1524 = vpack.c.b16 %v1507, %v1506
        %v1525 = vpack.c.b16 %v1509, %v1508
        %1526 = vrot.lane.b32.xlu0 %v1510, 4
        %v1527 = vpop.permute.xlu0 %1526
        %1528 = vrot.lane.b32.xlu0 %v1511, 4
        %v1529 = vpop.permute.xlu0 %1528
        %1530 = vrot.lane.b32.xlu0 %v1512, 4
        %v1531 = vpop.permute.xlu0 %1530
        %1532 = vrot.lane.b32.xlu0 %v1513, 4
        %v1533 = vpop.permute.xlu0 %1532
        %1534 = vrot.lane.b32.xlu0 %v1514, 4
        %v1535 = vpop.permute.xlu0 %1534
        %1536 = vrot.lane.b32.xlu0 %v1515, 4
        %v1537 = vpop.permute.xlu0 %1536
        %1538 = vrot.lane.b32.xlu0 %v1516, 4
        %v1539 = vpop.permute.xlu0 %1538
        %1540 = vrot.lane.b32.xlu0 %v1517, 4
        %v1541 = vpop.permute.xlu0 %1540
        %1542 = vrot.lane.b32.xlu0 %v1518, 4
        %v1543 = vpop.permute.xlu0 %1542
        %1544 = vrot.lane.b32.xlu0 %v1519, 4
        %v1545 = vpop.permute.xlu0 %1544
        %1546 = vrot.lane.b32.xlu0 %v1520, 4
        %v1547 = vpop.permute.xlu0 %1546
        %1548 = vrot.lane.b32.xlu0 %v1521, 4
        %v1549 = vpop.permute.xlu0 %1548
        %1550 = vrot.lane.b32.xlu0 %v1522, 4
        %v1551 = vpop.permute.xlu0 %1550
        %1552 = vrot.lane.b32.xlu0 %v1523, 4
        %v1553 = vpop.permute.xlu0 %1552
        %1554 = vrot.lane.b32.xlu0 %v1524, 4
        %v1555 = vpop.permute.xlu0 %1554
        %1556 = vrot.lane.b32.xlu0 %v1525, 4
        %v1557 = vpop.permute.xlu0 %1556
        %v1558 = vunpack.c.l.b16 %v1253
        %v1559 = vunpack.c.l.b16 %v1256
        %v1560 = vunpack.c.l.b16 %v1260
        %v1561 = vunpack.c.l.b16 %v1263
        %v1562 = vunpack.c.l.b16 %v1267
        %v1563 = vunpack.c.l.b16 %v1270
        %v1564 = vunpack.c.l.b16 %v1274
        %v1565 = vunpack.c.l.b16 %v1277
        %v1566 = vunpack.c.l.b16 %v1281
        %v1567 = vunpack.c.l.b16 %v1284
        %v1568 = vunpack.c.l.b16 %v1288
        %v1569 = vunpack.c.l.b16 %v1291
        %v1570 = vunpack.c.l.b16 %v1295
        %v1571 = vunpack.c.l.b16 %v1298
        %v1572 = vunpack.c.l.b16 %v1302
        %v1573 = vunpack.c.l.b16 %v1305
        %v1574 = vunpack.c.l.b16 %v1309
        %v1575 = vunpack.c.l.b16 %v1312
        %v1576 = vunpack.c.l.b16 %v1316
        %v1577 = vunpack.c.l.b16 %v1319
        %v1578 = vunpack.c.l.b16 %v1323
        %v1579 = vunpack.c.l.b16 %v1326
        %v1580 = vunpack.c.l.b16 %v1330
        %v1581 = vunpack.c.l.b16 %v1333
        %v1582 = vunpack.c.l.b16 %v1337
        %v1583 = vunpack.c.l.b16 %v1340
        %v1584 = vunpack.c.l.b16 %v1344
        %v1585 = vunpack.c.l.b16 %v1347
        %v1586 = vunpack.c.l.b16 %v1351
        %v1587 = vunpack.c.l.b16 %v1354
        %v1588 = vunpack.c.l.b16 %v1358
        %v1589 = vunpack.c.l.b16 %v1361
        %v1590 = vpack.c.b16 %v1559, %v1558
        %v1591 = vpack.c.b16 %v1561, %v1560
        %v1592 = vpack.c.b16 %v1563, %v1562
        %v1593 = vpack.c.b16 %v1565, %v1564
        %v1594 = vpack.c.b16 %v1567, %v1566
        %v1595 = vpack.c.b16 %v1569, %v1568
        %v1596 = vpack.c.b16 %v1571, %v1570
        %v1597 = vpack.c.b16 %v1573, %v1572
        %v1598 = vpack.c.b16 %v1575, %v1574
        %v1599 = vpack.c.b16 %v1577, %v1576
        %v1600 = vpack.c.b16 %v1579, %v1578
        %v1601 = vpack.c.b16 %v1581, %v1580
        %v1602 = vpack.c.b16 %v1583, %v1582
        %v1603 = vpack.c.b16 %v1585, %v1584
        %v1604 = vpack.c.b16 %v1587, %v1586
        %v1605 = vpack.c.b16 %v1589, %v1588
        %1606 = vrot.lane.b32.xlu0 %v1590, 8
        %v1607 = vpop.permute.xlu0 %1606
        %1608 = vrot.lane.b32.xlu0 %v1591, 8
        %v1609 = vpop.permute.xlu0 %1608
        %1610 = vrot.lane.b32.xlu0 %v1592, 8
        %v1611 = vpop.permute.xlu0 %1610
        %1612 = vrot.lane.b32.xlu0 %v1593, 8
        %v1613 = vpop.permute.xlu0 %1612
        %1614 = vrot.lane.b32.xlu0 %v1594, 8
        %v1615 = vpop.permute.xlu0 %1614
        %1616 = vrot.lane.b32.xlu0 %v1595, 8
        %v1617 = vpop.permute.xlu0 %1616
        %1618 = vrot.lane.b32.xlu0 %v1596, 8
        %v1619 = vpop.permute.xlu0 %1618
        %1620 = vrot.lane.b32.xlu0 %v1597, 8
        %v1621 = vpop.permute.xlu0 %1620
        %1622 = vrot.lane.b32.xlu0 %v1598, 8
        %v1623 = vpop.permute.xlu0 %1622
        %1624 = vrot.lane.b32.xlu0 %v1599, 8
        %v1625 = vpop.permute.xlu0 %1624
        %1626 = vrot.lane.b32.xlu0 %v1600, 8
        %v1627 = vpop.permute.xlu0 %1626
        %1628 = vrot.lane.b32.xlu0 %v1601, 8
        %v1629 = vpop.permute.xlu0 %1628
        %1630 = vrot.lane.b32.xlu0 %v1602, 8
        %v1631 = vpop.permute.xlu0 %1630
        %1632 = vrot.lane.b32.xlu0 %v1603, 8
        %v1633 = vpop.permute.xlu0 %1632
        %1634 = vrot.lane.b32.xlu0 %v1604, 8
        %v1635 = vpop.permute.xlu0 %1634
        %1636 = vrot.lane.b32.xlu0 %v1605, 8
        %v1637 = vpop.permute.xlu0 %1636
        %v1638 = vunpack.c.l.b16 %v806
        %v1639 = vunpack.c.l.b16 %v807
        %v1640 = vpack.c.b16 %v1639, %v1638
        %1641 = vrot.lane.b32.xlu0 %v1463, 12
        %v1642 = vpop.permute.xlu0 %1641
        %1643 = vrot.lane.b32.xlu0 %v1464, 12
        %v1644 = vpop.permute.xlu0 %1643
        %1645 = vrot.lane.b32.xlu0 %v1465, 12
        %v1646 = vpop.permute.xlu0 %1645
        %1647 = vrot.lane.b32.xlu0 %v1466, 12
        %v1648 = vpop.permute.xlu0 %1647
        %1649 = vrot.lane.b32.xlu0 %v1467, 12
        %v1650 = vpop.permute.xlu0 %1649
        %1651 = vrot.lane.b32.xlu0 %v1468, 12
        %v1652 = vpop.permute.xlu0 %1651
        %1653 = vrot.lane.b32.xlu0 %v1469, 12
        %v1654 = vpop.permute.xlu0 %1653
        %1655 = vrot.lane.b32.xlu0 %v1470, 12
        %v1656 = vpop.permute.xlu0 %1655
        %1657 = vrot.lane.b32.xlu0 %v1471, 12
        %v1658 = vpop.permute.xlu0 %1657
        %1659 = vrot.lane.b32.xlu0 %v1472, 12
        %v1660 = vpop.permute.xlu0 %1659
        %1661 = vrot.lane.b32.xlu0 %v1473, 12
        %v1662 = vpop.permute.xlu0 %1661
        %1663 = vrot.lane.b32.xlu0 %v1474, 12
        %v1664 = vpop.permute.xlu0 %1663
        %1665 = vrot.lane.b32.xlu0 %v1475, 12
        %v1666 = vpop.permute.xlu0 %1665
        %1667 = vrot.lane.b32.xlu0 %v1476, 12
        %v1668 = vpop.permute.xlu0 %1667
        %1669 = vrot.lane.b32.xlu0 %v1477, 12
        %v1670 = vpop.permute.xlu0 %1669
        %1671 = vrot.lane.b32.xlu0 %v1640, 12
        %v1672 = vpop.permute.xlu0 %1671
        %v1673 = vunpack.c.l.b16 %v1375
        %v1674 = vunpack.c.l.b16 %v1385
        %v1675 = vpack.c.b16 %v1674, %v1673
        %1676 = vrot.lane.b32.xlu0 %v1511, 16
        %v1677 = vpop.permute.xlu0 %1676
        %1678 = vrot.lane.b32.xlu0 %v1512, 16
        %v1679 = vpop.permute.xlu0 %1678
        %1680 = vrot.lane.b32.xlu0 %v1513, 16
        %v1681 = vpop.permute.xlu0 %1680
        %1682 = vrot.lane.b32.xlu0 %v1514, 16
        %v1683 = vpop.permute.xlu0 %1682
        %1684 = vrot.lane.b32.xlu0 %v1515, 16
        %v1685 = vpop.permute.xlu0 %1684
        %1686 = vrot.lane.b32.xlu0 %v1516, 16
        %v1687 = vpop.permute.xlu0 %1686
        %1688 = vrot.lane.b32.xlu0 %v1517, 16
        %v1689 = vpop.permute.xlu0 %1688
        %1690 = vrot.lane.b32.xlu0 %v1518, 16
        %v1691 = vpop.permute.xlu0 %1690
        %1692 = vrot.lane.b32.xlu0 %v1519, 16
        %v1693 = vpop.permute.xlu0 %1692
        %1694 = vrot.lane.b32.xlu0 %v1520, 16
        %v1695 = vpop.permute.xlu0 %1694
        %1696 = vrot.lane.b32.xlu0 %v1521, 16
        %v1697 = vpop.permute.xlu0 %1696
        %1698 = vrot.lane.b32.xlu0 %v1522, 16
        %v1699 = vpop.permute.xlu0 %1698
        %1700 = vrot.lane.b32.xlu0 %v1523, 16
        %v1701 = vpop.permute.xlu0 %1700
        %1702 = vrot.lane.b32.xlu0 %v1524, 16
        %v1703 = vpop.permute.xlu0 %1702
        %1704 = vrot.lane.b32.xlu0 %v1525, 16
        %v1705 = vpop.permute.xlu0 %1704
        %1706 = vrot.lane.b32.xlu0 %v1675, 16
        %v1707 = vpop.permute.xlu0 %1706
        %v1708 = vunpack.c.l.b16 %v1392
        %v1709 = vunpack.c.l.b16 %v1395
        %v1710 = vpack.c.b16 %v1709, %v1708
        %1711 = vrot.lane.b32.xlu0 %v1591, 20
        %v1712 = vpop.permute.xlu0 %1711
        %1713 = vrot.lane.b32.xlu0 %v1592, 20
        %v1714 = vpop.permute.xlu0 %1713
        %1715 = vrot.lane.b32.xlu0 %v1593, 20
        %v1716 = vpop.permute.xlu0 %1715
        %1717 = vrot.lane.b32.xlu0 %v1594, 20
        %v1718 = vpop.permute.xlu0 %1717
        %1719 = vrot.lane.b32.xlu0 %v1595, 20
        %v1720 = vpop.permute.xlu0 %1719
        %1721 = vrot.lane.b32.xlu0 %v1596, 20
        %v1722 = vpop.permute.xlu0 %1721
        %1723 = vrot.lane.b32.xlu0 %v1597, 20
        %v1724 = vpop.permute.xlu0 %1723
        %1725 = vrot.lane.b32.xlu0 %v1598, 20
        %v1726 = vpop.permute.xlu0 %1725
        %1727 = vrot.lane.b32.xlu0 %v1599, 20
        %v1728 = vpop.permute.xlu0 %1727
        %1729 = vrot.lane.b32.xlu0 %v1600, 20
        %v1730 = vpop.permute.xlu0 %1729
        %1731 = vrot.lane.b32.xlu0 %v1601, 20
        %v1732 = vpop.permute.xlu0 %1731
        %1733 = vrot.lane.b32.xlu0 %v1602, 20
        %v1734 = vpop.permute.xlu0 %1733
        %1735 = vrot.lane.b32.xlu0 %v1603, 20
        %v1736 = vpop.permute.xlu0 %1735
        %1737 = vrot.lane.b32.xlu0 %v1604, 20
        %v1738 = vpop.permute.xlu0 %1737
        %1739 = vrot.lane.b32.xlu0 %v1605, 20
        %v1740 = vpop.permute.xlu0 %1739
        %1741 = vrot.lane.b32.xlu0 %v1710, 20
        %v1742 = vpop.permute.xlu0 %1741
        %v1743 = vunpack.c.l.b16 %v809
        %v1744 = vunpack.c.l.b16 %v810
        %v1745 = vpack.c.b16 %v1744, %v1743
        %1746 = vrot.lane.b32.xlu0 %v1464, 24
        %v1747 = vpop.permute.xlu0 %1746
        %1748 = vrot.lane.b32.xlu0 %v1465, 24
        %v1749 = vpop.permute.xlu0 %1748
        %1750 = vrot.lane.b32.xlu0 %v1466, 24
        %v1751 = vpop.permute.xlu0 %1750
        %1752 = vrot.lane.b32.xlu0 %v1467, 24
        %v1753 = vpop.permute.xlu0 %1752
        %1754 = vrot.lane.b32.xlu0 %v1468, 24
        %v1755 = vpop.permute.xlu0 %1754
        %1756 = vrot.lane.b32.xlu0 %v1469, 24
        %v1757 = vpop.permute.xlu0 %1756
        %1758 = vrot.lane.b32.xlu0 %v1470, 24
        %v1759 = vpop.permute.xlu0 %1758
        %1760 = vrot.lane.b32.xlu0 %v1471, 24
        %v1761 = vpop.permute.xlu0 %1760
        %1762 = vrot.lane.b32.xlu0 %v1472, 24
        %v1763 = vpop.permute.xlu0 %1762
        %1764 = vrot.lane.b32.xlu0 %v1473, 24
        %v1765 = vpop.permute.xlu0 %1764
        %1766 = vrot.lane.b32.xlu0 %v1474, 24
        %v1767 = vpop.permute.xlu0 %1766
        %1768 = vrot.lane.b32.xlu0 %v1475, 24
        %v1769 = vpop.permute.xlu0 %1768
        %1770 = vrot.lane.b32.xlu0 %v1476, 24
        %v1771 = vpop.permute.xlu0 %1770
        %1772 = vrot.lane.b32.xlu0 %v1477, 24
        %v1773 = vpop.permute.xlu0 %1772
        %1774 = vrot.lane.b32.xlu0 %v1640, 24
        %v1775 = vpop.permute.xlu0 %1774
        %1776 = vrot.lane.b32.xlu0 %v1745, 24
        %v1777 = vpop.permute.xlu0 %1776
        %v1778 = vunpack.c.l.b16 %v1409
        %v1779 = vunpack.c.l.b16 %v1419
        %v1780 = vpack.c.b16 %v1779, %v1778
        %1781 = vrot.lane.b32.xlu0 %v1512, 28
        %v1782 = vpop.permute.xlu0 %1781
        %1783 = vrot.lane.b32.xlu0 %v1513, 28
        %v1784 = vpop.permute.xlu0 %1783
        %1785 = vrot.lane.b32.xlu0 %v1514, 28
        %v1786 = vpop.permute.xlu0 %1785
        %1787 = vrot.lane.b32.xlu0 %v1515, 28
        %v1788 = vpop.permute.xlu0 %1787
        %1789 = vrot.lane.b32.xlu0 %v1516, 28
        %v1790 = vpop.permute.xlu0 %1789
        %1791 = vrot.lane.b32.xlu0 %v1517, 28
        %v1792 = vpop.permute.xlu0 %1791
        %1793 = vrot.lane.b32.xlu0 %v1518, 28
        %v1794 = vpop.permute.xlu0 %1793
        %1795 = vrot.lane.b32.xlu0 %v1519, 28
        %v1796 = vpop.permute.xlu0 %1795
        %1797 = vrot.lane.b32.xlu0 %v1520, 28
        %v1798 = vpop.permute.xlu0 %1797
        %1799 = vrot.lane.b32.xlu0 %v1521, 28
        %v1800 = vpop.permute.xlu0 %1799
        %1801 = vrot.lane.b32.xlu0 %v1522, 28
        %v1802 = vpop.permute.xlu0 %1801
        %1803 = vrot.lane.b32.xlu0 %v1523, 28
        %v1804 = vpop.permute.xlu0 %1803
        %1805 = vrot.lane.b32.xlu0 %v1524, 28
        %v1806 = vpop.permute.xlu0 %1805
        %1807 = vrot.lane.b32.xlu0 %v1525, 28
        %v1808 = vpop.permute.xlu0 %1807
        %1809 = vrot.lane.b32.xlu0 %v1675, 28
        %v1810 = vpop.permute.xlu0 %1809
        %1811 = vrot.lane.b32.xlu0 %v1780, 28
        %v1812 = vpop.permute.xlu0 %1811
        %v1813 = vunpack.c.l.b16 %v1426
        %v1814 = vunpack.c.l.b16 %v1429
        %v1815 = vpack.c.b16 %v1814, %v1813
        %1816 = vrot.lane.b32.xlu0 %v1592, 32
        %v1817 = vpop.permute.xlu0 %1816
        %1818 = vrot.lane.b32.xlu0 %v1593, 32
        %v1819 = vpop.permute.xlu0 %1818
        %1820 = vrot.lane.b32.xlu0 %v1594, 32
        %v1821 = vpop.permute.xlu0 %1820
        %1822 = vrot.lane.b32.xlu0 %v1595, 32
        %v1823 = vpop.permute.xlu0 %1822
        %1824 = vrot.lane.b32.xlu0 %v1596, 32
        %v1825 = vpop.permute.xlu0 %1824
        %1826 = vrot.lane.b32.xlu0 %v1597, 32
        %v1827 = vpop.permute.xlu0 %1826
        %1828 = vrot.lane.b32.xlu0 %v1598, 32
        %v1829 = vpop.permute.xlu0 %1828
        %1830 = vrot.lane.b32.xlu0 %v1599, 32
        %v1831 = vpop.permute.xlu0 %1830
        %1832 = vrot.lane.b32.xlu0 %v1600, 32
        %v1833 = vpop.permute.xlu0 %1832
        %1834 = vrot.lane.b32.xlu0 %v1601, 32
        %v1835 = vpop.permute.xlu0 %1834
        %1836 = vrot.lane.b32.xlu0 %v1602, 32
        %v1837 = vpop.permute.xlu0 %1836
        %1838 = vrot.lane.b32.xlu0 %v1603, 32
        %v1839 = vpop.permute.xlu0 %1838
        %1840 = vrot.lane.b32.xlu0 %v1604, 32
        %v1841 = vpop.permute.xlu0 %1840
        %1842 = vrot.lane.b32.xlu0 %v1605, 32
        %v1843 = vpop.permute.xlu0 %1842
        %1844 = vrot.lane.b32.xlu0 %v1710, 32
        %v1845 = vpop.permute.xlu0 %1844
        %1846 = vrot.lane.b32.xlu0 %v1815, 32
        %v1847 = vpop.permute.xlu0 %1846
        %vm1848 = vcmask 31744
        %v1851 = vsel %vm1848, %v1462, %v1527
        %v1854 = vsel %vm1848, %v1463, %v1529
        %v1857 = vsel %vm1848, %v1464, %v1531
        %v1860 = vsel %vm1848, %v1465, %v1533
        %v1863 = vsel %vm1848, %v1466, %v1535
        %v1866 = vsel %vm1848, %v1467, %v1537
        %v1869 = vsel %vm1848, %v1468, %v1539
        %v1872 = vsel %vm1848, %v1469, %v1541
        %v1875 = vsel %vm1848, %v1470, %v1543
        %v1878 = vsel %vm1848, %v1471, %v1545
        %v1881 = vsel %vm1848, %v1472, %v1547
        %v1884 = vsel %vm1848, %v1473, %v1549
        %v1887 = vsel %vm1848, %v1474, %v1551
        %v1890 = vsel %vm1848, %v1475, %v1553
        %v1893 = vsel %vm1848, %v1476, %v1555
        %v1896 = vsel %vm1848, %v1477, %v1557
        %vm1897 = vcmask 64512
        %v1899 = vsel %vm1897, %v1851, %v1607
        %v1901 = vsel %vm1897, %v1854, %v1609
        %v1903 = vsel %vm1897, %v1857, %v1611
        %v1905 = vsel %vm1897, %v1860, %v1613
        %v1907 = vsel %vm1897, %v1863, %v1615
        %v1909 = vsel %vm1897, %v1866, %v1617
        %v1911 = vsel %vm1897, %v1869, %v1619
        %v1913 = vsel %vm1897, %v1872, %v1621
        %v1915 = vsel %vm1897, %v1875, %v1623
        %v1917 = vsel %vm1897, %v1878, %v1625
        %v1919 = vsel %vm1897, %v1881, %v1627
        %v1921 = vsel %vm1897, %v1884, %v1629
        %v1923 = vsel %vm1897, %v1887, %v1631
        %v1925 = vsel %vm1897, %v1890, %v1633
        %v1927 = vsel %vm1897, %v1893, %v1635
        %v1929 = vsel %vm1897, %v1896, %v1637
        %vm1930 = vcmask 97280
        %v1932 = vsel %vm1930, %v1899, %v1642
        %v1934 = vsel %vm1930, %v1901, %v1644
        %v1936 = vsel %vm1930, %v1903, %v1646
        %v1938 = vsel %vm1930, %v1905, %v1648
        %v1940 = vsel %vm1930, %v1907, %v1650
        %v1942 = vsel %vm1930, %v1909, %v1652
        %v1944 = vsel %vm1930, %v1911, %v1654
        %v1946 = vsel %vm1930, %v1913, %v1656
        %v1948 = vsel %vm1930, %v1915, %v1658
        %v1950 = vsel %vm1930, %v1917, %v1660
        %v1952 = vsel %vm1930, %v1919, %v1662
        %v1954 = vsel %vm1930, %v1921, %v1664
        %v1956 = vsel %vm1930, %v1923, %v1666
        %v1958 = vsel %vm1930, %v1925, %v1668
        %v1960 = vsel %vm1930, %v1927, %v1670
        %v1962 = vsel %vm1930, %v1929, %v1672
        %vm1963 = vcmask 130048
        %v1965 = vsel %vm1963, %v1932, %v1677
        %v1967 = vsel %vm1963, %v1934, %v1679
        %v1969 = vsel %vm1963, %v1936, %v1681
        %v1971 = vsel %vm1963, %v1938, %v1683
        %v1973 = vsel %vm1963, %v1940, %v1685
        %v1975 = vsel %vm1963, %v1942, %v1687
        %v1977 = vsel %vm1963, %v1944, %v1689
        %v1979 = vsel %vm1963, %v1946, %v1691
        %v1981 = vsel %vm1963, %v1948, %v1693
        %v1983 = vsel %vm1963, %v1950, %v1695
        %v1985 = vsel %vm1963, %v1952, %v1697
        %v1987 = vsel %vm1963, %v1954, %v1699
        %v1989 = vsel %vm1963, %v1956, %v1701
        %v1991 = vsel %vm1963, %v1958, %v1703
        %v1993 = vsel %vm1963, %v1960, %v1705
        %v1995 = vsel %vm1963, %v1962, %v1707
        %vm1996 = vcmask 162816
        %v1998 = vsel %vm1996, %v1965, %v1712
        %v2000 = vsel %vm1996, %v1967, %v1714
        %v2002 = vsel %vm1996, %v1969, %v1716
        %v2004 = vsel %vm1996, %v1971, %v1718
        %v2006 = vsel %vm1996, %v1973, %v1720
        %v2008 = vsel %vm1996, %v1975, %v1722
        %v2010 = vsel %vm1996, %v1977, %v1724
        %v2012 = vsel %vm1996, %v1979, %v1726
        %v2014 = vsel %vm1996, %v1981, %v1728
        %v2016 = vsel %vm1996, %v1983, %v1730
        %v2018 = vsel %vm1996, %v1985, %v1732
        %v2020 = vsel %vm1996, %v1987, %v1734
        %v2022 = vsel %vm1996, %v1989, %v1736
        %v2024 = vsel %vm1996, %v1991, %v1738
        %v2026 = vsel %vm1996, %v1993, %v1740
        %v2028 = vsel %vm1996, %v1995, %v1742
        %vm2029 = vcmask 195584
        %v2031 = vsel %vm2029, %v1998, %v1747
        %v2033 = vsel %vm2029, %v2000, %v1749
        %v2035 = vsel %vm2029, %v2002, %v1751
        %v2037 = vsel %vm2029, %v2004, %v1753
        %v2039 = vsel %vm2029, %v2006, %v1755
        %v2041 = vsel %vm2029, %v2008, %v1757
        %v2043 = vsel %vm2029, %v2010, %v1759
        %v2045 = vsel %vm2029, %v2012, %v1761
        %v2047 = vsel %vm2029, %v2014, %v1763
        %v2049 = vsel %vm2029, %v2016, %v1765
        %v2051 = vsel %vm2029, %v2018, %v1767
        %v2053 = vsel %vm2029, %v2020, %v1769
        %v2055 = vsel %vm2029, %v2022, %v1771
        %v2057 = vsel %vm2029, %v2024, %v1773
        %v2059 = vsel %vm2029, %v2026, %v1775
        %v2061 = vsel %vm2029, %v2028, %v1777
        %vm2062 = vcmask 228352
        %v2064 = vsel %vm2062, %v2031, %v1782
        %v2066 = vsel %vm2062, %v2033, %v1784
        %v2068 = vsel %vm2062, %v2035, %v1786
        %v2070 = vsel %vm2062, %v2037, %v1788
        %v2072 = vsel %vm2062, %v2039, %v1790
        %v2074 = vsel %vm2062, %v2041, %v1792
        %v2076 = vsel %vm2062, %v2043, %v1794
        %v2078 = vsel %vm2062, %v2045, %v1796
        %v2080 = vsel %vm2062, %v2047, %v1798
        %v2082 = vsel %vm2062, %v2049, %v1800
        %v2084 = vsel %vm2062, %v2051, %v1802
        %v2086 = vsel %vm2062, %v2053, %v1804
        %v2088 = vsel %vm2062, %v2055, %v1806
        %v2090 = vsel %vm2062, %v2057, %v1808
        %v2092 = vsel %vm2062, %v2059, %v1810
        %v2094 = vsel %vm2062, %v2061, %v1812
        %vm2095 = vcmask 261120
        %v2097 = vsel %vm2095, %v2064, %v1817
        %v2099 = vsel %vm2095, %v2066, %v1819
        %v2101 = vsel %vm2095, %v2068, %v1821
        %v2103 = vsel %vm2095, %v2070, %v1823
        %v2105 = vsel %vm2095, %v2072, %v1825
        %v2107 = vsel %vm2095, %v2074, %v1827
        %v2109 = vsel %vm2095, %v2076, %v1829
        %v2111 = vsel %vm2095, %v2078, %v1831
        %v2113 = vsel %vm2095, %v2080, %v1833
        %v2115 = vsel %vm2095, %v2082, %v1835
        %v2117 = vsel %vm2095, %v2084, %v1837
        %v2119 = vsel %vm2095, %v2086, %v1839
        %v2121 = vsel %vm2095, %v2088, %v1841
        %v2123 = vsel %vm2095, %v2090, %v1843
        %v2125 = vsel %vm2095, %v2092, %v1845
        %v2127 = vsel %vm2095, %v2094, %v1847
        %v2128 = vld [vmem:[%s2] sm:$0xf]
        %v2129 = vld [vmem:[%s2 + $0x4] sm:$0xf]
        %v2130 = vld [vmem:[%s2 + $0x8] sm:$0xf]
        %v2131 = vld [vmem:[%s2 + $0xc] sm:$0xf]
        %v2132 = vld [vmem:[%s2 + $0x10] sm:$0x3]
        %v2138 = vunpack.c.l.b16 %v2128
        %v2139 = vunpack.c.l.b16 %v2129
        %v2140 = vunpack.c.l.b16 %v2130
        %v2141 = vunpack.c.l.b16 %v2131
        %v2142 = vunpack.c.l.b16 %v2132
        %v2143 = vpack.c.b16 %v2139, %v2138
        %v2144 = vpack.c.b16 %v2141, %v2140
        %v2145 = vpack.c.b16 %v2142, %v2142
        %vm2148 = vcmask 293888
        %v2149 = vsel %vm2148, %v2097, 0
        %v2151 = vsel %vm2148, %v2099, 0
        %v2153 = vsel %vm2148, %v2101, 0
        %v2155 = vsel %vm2148, %v2103, 0
        %v2157 = vsel %vm2148, %v2105, 0
        %v2159 = vsel %vm2148, %v2107, 0
        %v2161 = vsel %vm2148, %v2109, 0
        %v2163 = vsel %vm2148, %v2111, 0
        %v2165 = vsel %vm2148, %v2113, 0
        %v2167 = vsel %vm2148, %v2115, 0
        %v2169 = vsel %vm2148, %v2117, 0
        %v2171 = vsel %vm2148, %v2119, 0
        %v2173 = vsel %vm2148, %v2121, 0
        %v2175 = vsel %vm2148, %v2123, 0
        %v2177 = vsel %vm2148, %v2125, 0
        %v2179 = vsel %vm2148, %v2127, 0
        %vm2181 = vcmask 1041408
        %v2183 = vsel %vm2181, %v2145, 0
        %2185 = vmatpush.bf16.msra.mxu0 0
        %2186 = vmatpush.bf16.msra.mxu0 0
        %2187 = vmatpush.bf16.msra.mxu0 0
        %2188 = vmatpush.bf16.msra.mxu0 0
        %2189 = vmatpush.bf16.msra.mxu0 0
        %2190 = vmatpush.bf16.msra.mxu0 %v2183
        %2191 = vmatpush.bf16.msra.mxu0 %v2144
        %2192 = vmatpush.bf16.msra.mxu0 %v2143
        %2193 = vmatmul.bf16.gmra.mxu0 %v2149
        %v2194 = vpop.f32.mrf.mxu0
        %v2195 = vadd.f32 0.0, %v2194
        %v2196 = vpop.f32.mrf.mxu0
        %v2197 = vadd.f32 0.0, %v2196
        %2198 = vmatmul.bf16.gmra.mxu0 %v2151
        %v2199 = vpop.f32.mrf.mxu0
        %v2200 = vadd.f32 0.0, %v2199
        %v2201 = vpop.f32.mrf.mxu0
        %v2202 = vadd.f32 0.0, %v2201
        %2203 = vmatmul.bf16.gmra.mxu0 %v2153
        %v2204 = vpop.f32.mrf.mxu0
        %v2205 = vadd.f32 0.0, %v2204
        %v2206 = vpop.f32.mrf.mxu0
        %v2207 = vadd.f32 0.0, %v2206
        %2208 = vmatmul.bf16.gmra.mxu0 %v2155
        %v2209 = vpop.f32.mrf.mxu0
        %v2210 = vadd.f32 0.0, %v2209
        %v2211 = vpop.f32.mrf.mxu0
        %v2212 = vadd.f32 0.0, %v2211
        %2213 = vmatmul.bf16.gmra.mxu0 %v2157
        %v2214 = vpop.f32.mrf.mxu0
        %v2215 = vadd.f32 0.0, %v2214
        %v2216 = vpop.f32.mrf.mxu0
        %v2217 = vadd.f32 0.0, %v2216
        %2218 = vmatmul.bf16.gmra.mxu0 %v2159
        %v2219 = vpop.f32.mrf.mxu0
        %v2220 = vadd.f32 0.0, %v2219
        %v2221 = vpop.f32.mrf.mxu0
        %v2222 = vadd.f32 0.0, %v2221
        %2223 = vmatmul.bf16.gmra.mxu0 %v2161
        %v2224 = vpop.f32.mrf.mxu0
        %v2225 = vadd.f32 0.0, %v2224
        %v2226 = vpop.f32.mrf.mxu0
        %v2227 = vadd.f32 0.0, %v2226
        %2228 = vmatmul.bf16.gmra.mxu0 %v2163
        %v2229 = vpop.f32.mrf.mxu0
        %v2230 = vadd.f32 0.0, %v2229
        %v2231 = vpop.f32.mrf.mxu0
        %v2232 = vadd.f32 0.0, %v2231
        %2233 = vmatmul.bf16.gmra.mxu0 %v2165
        %v2234 = vpop.f32.mrf.mxu0
        %v2235 = vadd.f32 0.0, %v2234
        %v2236 = vpop.f32.mrf.mxu0
        %v2237 = vadd.f32 0.0, %v2236
        %2238 = vmatmul.bf16.gmra.mxu0 %v2167
        %v2239 = vpop.f32.mrf.mxu0
        %v2240 = vadd.f32 0.0, %v2239
        %v2241 = vpop.f32.mrf.mxu0
        %v2242 = vadd.f32 0.0, %v2241
        %2243 = vmatmul.bf16.gmra.mxu0 %v2169
        %v2244 = vpop.f32.mrf.mxu0
        %v2245 = vadd.f32 0.0, %v2244
        %v2246 = vpop.f32.mrf.mxu0
        %v2247 = vadd.f32 0.0, %v2246
        %2248 = vmatmul.bf16.gmra.mxu0 %v2171
        %v2249 = vpop.f32.mrf.mxu0
        %v2250 = vadd.f32 0.0, %v2249
        %v2251 = vpop.f32.mrf.mxu0
        %v2252 = vadd.f32 0.0, %v2251
        %2253 = vmatmul.bf16.gmra.mxu0 %v2173
        %v2254 = vpop.f32.mrf.mxu0
        %v2255 = vadd.f32 0.0, %v2254
        %v2256 = vpop.f32.mrf.mxu0
        %v2257 = vadd.f32 0.0, %v2256
        %2258 = vmatmul.bf16.gmra.mxu0 %v2175
        %v2259 = vpop.f32.mrf.mxu0
        %v2260 = vadd.f32 0.0, %v2259
        %v2261 = vpop.f32.mrf.mxu0
        %v2262 = vadd.f32 0.0, %v2261
        %2263 = vmatmul.bf16.gmra.mxu0 %v2177
        %v2264 = vpop.f32.mrf.mxu0
        %v2265 = vadd.f32 0.0, %v2264
        %v2266 = vpop.f32.mrf.mxu0
        %v2267 = vadd.f32 0.0, %v2266
        %2268 = vmatmul.bf16.gmra.mxu0 %v2179
        %v2269 = vpop.f32.mrf.mxu0
        %v2270 = vadd.f32 0.0, %v2269
        %v2271 = vpop.f32.mrf.mxu0
        %v2272 = vadd.f32 0.0, %v2271
        %2273 = vdwg.mxu0
        %2274 = vst [vmem:[%s201] sm:$0xff] %v2195
        %2275 = vst [vmem:[%s201 + $0x8] sm:$0xff] %v2197
        %2276 = vst [vmem:[%s201 + $0x10] sm:$0xff] %v2200
        %2277 = vst [vmem:[%s201 + $0x18] sm:$0xff] %v2202
        %2278 = vst [vmem:[%s201 + $0x20] sm:$0xff] %v2205
        %2279 = vst [vmem:[%s201 + $0x28] sm:$0xff] %v2207
        %2280 = vst [vmem:[%s201 + $0x30] sm:$0xff] %v2210
        %2281 = vst [vmem:[%s201 + $0x38] sm:$0xff] %v2212
        %2282 = vst [vmem:[%s201 + $0x40] sm:$0xff] %v2215
        %2283 = vst [vmem:[%s201 + $0x48] sm:$0xff] %v2217
        %2284 = vst [vmem:[%s201 + $0x50] sm:$0xff] %v2220
        %2285 = vst [vmem:[%s201 + $0x58] sm:$0xff] %v2222
        %2286 = vst [vmem:[%s201 + $0x60] sm:$0xff] %v2225
        %2287 = vst [vmem:[%s201 + $0x68] sm:$0xff] %v2227
        %2288 = vst [vmem:[%s201 + $0x70] sm:$0xff] %v2230
        %2289 = vst [vmem:[%s201 + $0x78] sm:$0xff] %v2232
        %2290 = vst [vmem:[%s201 + $0x80] sm:$0xff] %v2235
        %2291 = vst [vmem:[%s201 + $0x88] sm:$0xff] %v2237
        %2292 = vst [vmem:[%s201 + $0x90] sm:$0xff] %v2240
        %2293 = vst [vmem:[%s201 + $0x98] sm:$0xff] %v2242
        %2294 = vst [vmem:[%s201 + $0xa0] sm:$0xff] %v2245
        %2295 = vst [vmem:[%s201 + $0xa8] sm:$0xff] %v2247
        %2296 = vst [vmem:[%s201 + $0xb0] sm:$0xff] %v2250
        %2297 = vst [vmem:[%s201 + $0xb8] sm:$0xff] %v2252
        %2298 = vst [vmem:[%s201 + $0xc0] sm:$0xff] %v2255
        %2299 = vst [vmem:[%s201 + $0xc8] sm:$0xff] %v2257
        %2300 = vst [vmem:[%s201 + $0xd0] sm:$0xff] %v2260
        %2301 = vst [vmem:[%s201 + $0xd8] sm:$0xff] %v2262
        %2302 = vst [vmem:[%s201 + $0xe0] sm:$0xff] %v2265
        %2303 = vst [vmem:[%s201 + $0xe8] sm:$0xff] %v2267
        %2304 = vst [vmem:[%s201 + $0xf0] sm:$0xff] %v2270
        %2305 = vst [vmem:[%s201 + $0xf8] sm:$0xff] %v2272
        %s2306 = sand.u32 %s110, 1
        %s2307 = scalar_lea.sflag [#allocation3], %s2306
        %s2308 = sand.u32 %s110, 1
        %s2309 = smul.addr %s2308, 256
        %s2310 = scalar_lea.vmem [#allocation5], %s2309
        // Predicated region
        $region37: #{tpu_custom_call.1} parent=31 // pred_check
          %p2311 = pneg %p120
        $region38: #{tpu_custom_call.1} parent=31 // pred_check_branch
          %2313 = sbr.rel (%p2311) target = $region40
        $region39: #{tpu_custom_call.1} parent=31 // pred_region
          %s2314 = sadd.s32 %s22, %s23
          %s2315 = smul.u32 32, %s2314
          %2317 = vsyncadd %s2307, 0
          %s2318 = smul.addr %s2315, 8
          %s2319 = scalar_lea.hbm %s3, %s2318
          %s2320 = sshll.u32 %s2310, 4
          %s2321 = int_to_ptr.vmem [resolvable:$true] %s2320
          %s2322 = sshll.u32 %s2319, 4
          %s2323 = int_to_ptr.hbm [resolvable:$true] %s2322
          %2328 = dma.vmem_to_hbm [thread:$0]  %s2321, 4096, %s2323, %s2307, 128, 128, 8
        $region40: #{tpu_custom_call.1} parent=31 // pred_fallthru
          _
      $region32: #{tpu_custom_call.1} parent=5 // pred_fallthru
        _
      %p2329 = scmp.le.s32.totalorder 2, %s13
      // Predicated region
      $region41: #{tpu_custom_call.1} parent=5 // pred_check
        %p2330 = pneg %p2329
      $region42: #{tpu_custom_call.1} parent=5 // pred_check_branch
        %2332 = sbr.rel (%p2330) target = $region44
      $region43: #{tpu_custom_call.1} parent=5 // pred_region
        %s2333 = ssub.s32 %s13, 2
        // Predicated region
        $region45: #{tpu_custom_call.1} parent=43 // pred_check
          %p2334 = pneg %p126
        $region46: #{tpu_custom_call.1} parent=43 // pred_check_branch
          %2336 = sbr.rel (%p2334) target = $region48
        $region47: #{tpu_custom_call.1} parent=43 // pred_region
          %s2337 = sand.u32 %s111, 1
          %s2338 = scalar_lea.sflag [#allocation3], %s2337
          %s2339 = sand.u32 %s111, 1
          %s2340 = smul.addr %s2339, 256
          %s2341 = scalar_lea.vmem [#allocation5], %s2340
          %2343 = dma.done %s2338, 4096
        $region48: #{tpu_custom_call.1} parent=43 // pred_fallthru
          _
      $region44: #{tpu_custom_call.1} parent=5 // pred_fallthru
        _
    $region6: #{tpu_custom_call.1} parent=1 // loop_footer
      %s17 = sadd.s32 1, %s13
    $region7: #{tpu_custom_call.1} parent=1 // loop_footer_branch
      %12 = sbr.rel target = $region3
    $region8: #{tpu_custom_call.1} parent=1 // loop_exit
      _
    %2344 = vsyncpa [#allocation3], 1
    %s2345 = scalar_lea.sflag [#allocation3], 1
    %2346 = vsyncpa %s2345, 1
    %2347 = vsyncpa [#allocation4], 1
    %s2348 = scalar_lea.sflag [#allocation4], 1
    %2349 = vsyncpa %s2348, 1

</llo_original>
